<compile_context>
chip_gen: v6e
topology: v6e:2x2x1
jax: 0.10.0
libtpu: 0.0.40
codegen_flags: <defaults>
</compile_context>

<pallas_src>
import functools

import jax
import jax.numpy as jnp
from jax.experimental import pallas as pl
from jax.experimental.pallas import tpu as pltpu

_EPS = 1e-5
_N_OUT = 7          # true head width
_HEAD_PAD = 128     # lane-dense padded head width


def _layernorm(h, gamma, beta):
    # Two-pass variance: mu, then mean((h - mu)^2).  Matches torch.nn.LayerNorm
    # and avoids catastrophic cancellation of the single-pass form.
    mu = jnp.mean(h, axis=-1, keepdims=True)
    d = h - mu
    var = jnp.mean(d * d, axis=-1, keepdims=True)
    return d * jax.lax.rsqrt(var + _EPS) * gamma + beta
    # TODO(synk): if a bundle dump shows the XLU saturating on v6e/v7x, move
    # the two row reductions onto the MXU via h @ ones[D, 8] (MXU has slack).


def _esn_kernel(x_ref,
                w1_ref, b1_ref, g1_ref, be1_ref,
                w2_ref, b2_ref, g2_ref, be2_ref,
                w3_ref, b3_ref, g3_ref, be3_ref,
                w4_ref, b4_ref,
                lo_ref, hi_ref, mr_ref, ms_ref, me_ref,
                o_ref):
    x = x_ref[...]                                    # [TB, 1] f32

    # ---- block 1: Linear(1,256) as VPU broadcast (no MXU for K=1) ----
    h = x * w1_ref[...] + b1_ref[...]                 # [TB,1]*[1,256] -> [TB,256]
    h = _layernorm(h, g1_ref[...], be1_ref[...])
    h = jnp.maximum(h, 0.0)                           # Dropout(eval) = identity

    # ---- block 2: Linear(256,512), bf16 operands -> f32 acc ----
    h = jnp.dot(h.astype(jnp.bfloat16), w2_ref[...],
                preferred_element_type=jnp.float32) + b2_ref[...]
    h = _layernorm(h, g2_ref[...], be2_ref[...])
    h = jnp.maximum(h, 0.0)

    # ---- block 3: Linear(512,256) ----
    h = jnp.dot(h.astype(jnp.bfloat16), w3_ref[...],
                preferred_element_type=jnp.float32) + b3_ref[...]
    h = _layernorm(h, g3_ref[...], be3_ref[...])
    h = jnp.maximum(h, 0.0)

    # ---- head: Linear(256,7) padded to 128 lanes (lane-dense store) ----
    raw = jnp.dot(h.astype(jnp.bfloat16), w4_ref[...],
                  preferred_element_type=jnp.float32) + b4_ref[...]   # [TB,128]

    # ---- constrain_parameters, fused ----
    # Per-column semantics (torch order = clamp first, then round):
    #   col 0      : round(clip(x, 10, 1000))
    #   cols 1, 3  : round(clip(x, 2, 50))
    #   cols 2, 4  : sigmoid(x)                (lo/hi = +-1e30 there -> no clip)
    #   cols 5, 6  : exp(clip(x, -5, 2))       (also the default for pad cols)
    c = jnp.clip(raw, lo_ref[...], hi_ref[...])       # one clip, all columns
    rounded = jnp.round(c)                            # VPU
    sig = jax.nn.sigmoid(c)                           # EUP
    expd = jnp.exp(jnp.minimum(c, 2.0))               # EUP; min() guards overflow
    # Arithmetic blend via resident 0/1 column masks (mr+ms+me == 1 per column).
    out = mr_ref[...] * rounded + ms_ref[...] * sig + me_ref[...] * expd
    o_ref[...] = out.astype(o_ref.dtype)


def _round_up(n, m):
    return (n + m - 1) // m * m


def _prepare_params(params):
    """Cast / pad module-shaped params into kernel-friendly layouts."""
    (w1, b1, g1, be1, w2, b2, g2, be2, w3, b3, g3, be3, w4, b4) = params
    w1p = w1.reshape(1, -1).astype(jnp.float32)          # [1,256] broadcast weight
    w2p = w2.astype(jnp.bfloat16)                        # [256,512]
    w3p = w3.astype(jnp.bfloat16)                        # [512,256]
    # Pad 7-wide head to 128 lanes (zero columns) for a lane-dense output.
    w4p = jnp.zeros((w4.shape[0], _HEAD_PAD), jnp.float32)
    w4p = w4p.at[:, :_N_OUT].set(w4).astype(jnp.bfloat16)
    b4p = jnp.zeros((1, _HEAD_PAD), jnp.float32)
    b4p = b4p.at[:, :_N_OUT].set(b4.reshape(1, -1))
    return (w1p, b1, g1, be1, w2p, b2, g2, be2, w3p, b3, g3, be3, w4p, b4p)


def _constraint_tables():
    """Resident [1,128] clip bounds and branch-selection masks."""
    lo = jnp.full((_HEAD_PAD,), -5.0, jnp.float32)       # default = exp branch
    hi = jnp.full((_HEAD_PAD,), 2.0, jnp.float32)
    lo = lo.at[0].set(10.0);   hi = hi.at[0].set(1000.0)
    lo = lo.at[1].set(2.0);    hi = hi.at[1].set(50.0)
    lo = lo.at[3].set(2.0);    hi = hi.at[3].set(50.0)
    lo = lo.at[2].set(-1e30);  hi = hi.at[2].set(1e30)   # sigmoid cols: no clip
    lo = lo.at[4].set(-1e30);  hi = hi.at[4].set(1e30)
    mr = jnp.zeros((_HEAD_PAD,), jnp.float32).at[jnp.array([0, 1, 3])].set(1.0)
    ms = jnp.zeros((_HEAD_PAD,), jnp.float32).at[jnp.array([2, 4])].set(1.0)
    me = 1.0 - mr - ms
    return (lo.reshape(1, -1), hi.reshape(1, -1),
            mr.reshape(1, -1), ms.reshape(1, -1), me.reshape(1, -1))


@functools.partial(jax.jit, static_argnames=("tile_b", "vmem_limit_bytes"))
def _esn_forward(x, params, *, tile_b, vmem_limit_bytes):
    B = x.shape[0]
    tb = tile_b
    Bp = _round_up(B, tb)
    if Bp != B:
        x = jnp.pad(x, ((0, Bp - B), (0, 0)))

    kparams = _prepare_params(params) + _constraint_tables()

    def const_spec(arr):
        # Full-array block with a constant index_map: DMA'd once, resident
        # across all grid steps.  (pl.Buffered(1) would save ~0.5 MiB of VMEM
        # but is only worth it when pushing tile_b to the v7x VMEM edge.)
        return pl.BlockSpec(arr.shape, lambda i: (0, 0))

    in_specs = [pl.BlockSpec((tb, 1), lambda i: (i, 0))]
    in_specs += [const_spec(p) for p in kparams]

    out_padded = pl.pallas_call(
        _esn_kernel,
        out_shape=jax.ShapeDtypeStruct((Bp, _HEAD_PAD), jnp.float32),
        grid=(Bp // tb,),
        in_specs=in_specs,
        out_specs=pl.BlockSpec((tb, _HEAD_PAD), lambda i: (i, 0)),
        compiler_params=pltpu.CompilerParams(
            dimension_semantics=("parallel",),   # shard batch over 2 TCs on v7x
            vmem_limit_bytes=vmem_limit_bytes,
        ),
    )(x, *kparams)

    return out_padded[:B, :_N_OUT]


def _tpu_class():
    """Coarse device class: 'v7x' (64 MiB VMEM, 2 TCs) vs 'big' (>=128 MiB VMEM)."""
    try:
        kind = jax.devices()[0].device_kind.lower()
    except Exception:
        return "unknown"
    if "v7" in kind or "7x" in kind:
        return "v7x"
    if any(tag in kind for tag in ("v6", "v5", "v4", "v3")):
        return "big"
    return "unknown"


def esn_parameter_predictor(x, params, *, tile_b=None):
    """x: [B, 1] float32 -> [B, 7] float32 constrained ESN parameters."""
    B = x.shape[0]
    cls = _tpu_class()

    if tile_b is None:
        # Big tiles amortize the ~0.35 us/grid-step overhead.  v5e/v6e have
        # 128 MiB VMEM -> 4096; v7x has 64 MiB/TC -> cap at 2048.
        tile_b = 4096 if cls == "big" else 2048
    if cls == "big":
        vmem_limit = 96 << 20      # physical 128 MiB on v4/v5e/v6e
    elif cls == "v7x":
        vmem_limit = 52 << 20      # physical 64 MiB per TC on v7x
    else:
        vmem_limit = 48 << 20      # conservative fallback

    tb = min(tile_b, _round_up(max(B, 8), 8))
    if cls == "v7x":
        # Guarantee >= 2 grid steps so ("parallel",) can shard over both TCs.
        tb = min(tb, _round_up(max(-(-B // 2), 8), 8))
    tb = max(8, _round_up(tb, 8))

    return _esn_forward(x, params, tile_b=tb, vmem_limit_bytes=vmem_limit)


def init_params(key):
    """Deterministic synthetic parameters (shapes match the nn.Module)."""
    ks = jax.random.split(key, 8)

    def lin(kw, kb, fan_in, fan_out):
        s = 1.0 / jnp.sqrt(fan_in)
        w = jax.random.uniform(kw, (fan_in, fan_out), jnp.float32, -s, s)
        b = jax.random.uniform(kb, (1, fan_out), jnp.float32, -s, s)
        return w, b

    w1, b1 = lin(ks[0], ks[1], 1, 256)
    w2, b2 = lin(ks[2], ks[3], 256, 512)
    w3, b3 = lin(ks[4], ks[5], 512, 256)
    w4, b4 = lin(ks[6], ks[7], 256, 7)

    # LayerNorm affine params (PyTorch default init: weight=1, bias=0)
    g1, be1 = jnp.ones((1, 256), jnp.float32), jnp.zeros((1, 256), jnp.float32)
    g2, be2 = jnp.ones((1, 512), jnp.float32), jnp.zeros((1, 512), jnp.float32)
    g3, be3 = jnp.ones((1, 256), jnp.float32), jnp.zeros((1, 256), jnp.float32)

    return (w1, b1, g1, be1,
            w2, b2, g2, be2,
            w3, b3, g3, be3,
            w4, b4)


def _reference(x, params):
    """Pure-JAX f32 forward pass mirroring the PyTorch module (eval mode)."""
    (w1, b1, g1, be1, w2, b2, g2, be2, w3, b3, g3, be3, w4, b4) = params

    def ln(h, g, b):
        mu = jnp.mean(h, -1, keepdims=True)
        var = jnp.mean((h - mu) ** 2, -1, keepdims=True)
        return (h - mu) / jnp.sqrt(var + _EPS) * g + b

    h = jnp.maximum(ln(x @ w1.reshape(1, -1) + b1, g1, be1), 0.0)
    h = jnp.maximum(ln(h @ w2 + b2, g2, be2), 0.0)
    h = jnp.maximum(ln(h @ w3 + b3, g3, be3), 0.0)
    r = h @ w4 + b4
    res = jnp.round(jnp.clip(r[:, 0], 10.0, 1000.0))
    k = jnp.round(jnp.clip(r[:, 1], 2.0, 50.0))
    p = jax.nn.sigmoid(r[:, 2])
    m = jnp.round(jnp.clip(r[:, 3], 2.0, 50.0))
    a = jax.nn.sigmoid(r[:, 4])
    s1 = jnp.exp(jnp.clip(r[:, 5], -5.0, 2.0))
    s2 = jnp.exp(jnp.clip(r[:, 6], -5.0, 2.0))
    return jnp.stack([res, k, p, m, a, s1, s2], axis=1)


if __name__ == "__main__":
    key = jax.random.PRNGKey(0)
    k_params, k_x = jax.random.split(key)

    params = init_params(k_params)

    # Small batch (module takes [B, 1] inputs).
    B = 8
    x = jax.random.normal(k_x, (B, 1), jnp.float32)
    out = jax.block_until_ready(esn_parameter_predictor(x, params))

    assert out.shape == (B, _N_OUT)
    assert out.dtype == jnp.float32
    assert bool(jnp.all(jnp.isfinite(out)))
    # Constraint sanity: col0 in [10,1000], cols 1/3 in [2,50],
    # cols 2/4 in (0,1), cols 5/6 in [exp(-5), exp(2)].
    assert bool(jnp.all((out[:, 0] >= 10.0) & (out[:, 0] <= 1000.0)))
    assert bool(jnp.all((out[:, 1] >= 2.0) & (out[:, 1] <= 50.0)))
    assert bool(jnp.all((out[:, 3] >= 2.0) & (out[:, 3] <= 50.0)))
    assert bool(jnp.all((out[:, 2] > 0.0) & (out[:, 2] < 1.0)))
    assert bool(jnp.all((out[:, 4] > 0.0) & (out[:, 4] < 1.0)))
    assert bool(jnp.all((out[:, 5:7] >= jnp.exp(-5.0) - 1e-6)
                        & (out[:, 5:7] <= jnp.exp(2.0) + 1e-4)))

    # Numeric parity vs. a pure-f32 JAX reference (kernel uses bf16 MXU paths,
    # so tolerances are loose; rounded cols may differ by a unit near .5).
    ref = _reference(x, params)
    rounded_cols = jnp.array([0, 1, 3])
    other_cols = jnp.array([2, 4, 5, 6])
    assert bool(jnp.all(jnp.abs(out[:, rounded_cols] - ref[:, rounded_cols])
                        <= 2.0 + 0.02 * jnp.abs(ref[:, rounded_cols])))
    assert bool(jnp.all(jnp.abs(out[:, other_cols] - ref[:, other_cols])
                        <= 0.05 + 0.1 * jnp.abs(ref[:, other_cols])))

    # Exercise a multi-step batch grid (grid > 1) with a small tile.
    B2 = 64
    x2 = jax.random.normal(k_x, (B2, 1), jnp.float32)
    out2 = jax.block_until_ready(
        esn_parameter_predictor(x2, params, tile_b=16))
    assert out2.shape == (B2, _N_OUT)
    assert bool(jnp.all(jnp.isfinite(out2)))

    print("KERNEL_OK")
</pallas_src>

<mosaic_0001>
module attributes {stable_mosaic.version = 11 : i64} {
  func.func @_esn_kernel(%arg0: i32, %arg1: memref<8x1xf32, #tpu.memory_space<vmem>>, %arg2: memref<1x256xf32, #tpu.memory_space<vmem>>, %arg3: memref<1x256xf32, #tpu.memory_space<vmem>>, %arg4: memref<1x256xf32, #tpu.memory_space<vmem>>, %arg5: memref<1x256xf32, #tpu.memory_space<vmem>>, %arg6: memref<256x512xbf16, #tpu.memory_space<vmem>>, %arg7: memref<1x512xf32, #tpu.memory_space<vmem>>, %arg8: memref<1x512xf32, #tpu.memory_space<vmem>>, %arg9: memref<1x512xf32, #tpu.memory_space<vmem>>, %arg10: memref<512x256xbf16, #tpu.memory_space<vmem>>, %arg11: memref<1x256xf32, #tpu.memory_space<vmem>>, %arg12: memref<1x256xf32, #tpu.memory_space<vmem>>, %arg13: memref<1x256xf32, #tpu.memory_space<vmem>>, %arg14: memref<256x128xbf16, #tpu.memory_space<vmem>>, %arg15: memref<1x128xf32, #tpu.memory_space<vmem>>, %arg16: memref<1x128xf32, #tpu.memory_space<vmem>>, %arg17: memref<1x128xf32, #tpu.memory_space<vmem>>, %arg18: memref<1x128xf32, #tpu.memory_space<vmem>>, %arg19: memref<1x128xf32, #tpu.memory_space<vmem>>, %arg20: memref<1x128xf32, #tpu.memory_space<vmem>>, %arg21: memref<8x128xf32, #tpu.memory_space<vmem>>) attributes {dimension_semantics = [#tpu.dimension_semantics<parallel>], iteration_bounds = array<i64: 1>, scalar_prefetch = 0 : i64, scratch_operands = 0 : i64, tpu.core_type = #tpu.core_type<tc>, window_params = [{transform_indices = @transform_0, window_bounds = array<i64: 8, 1>}, {pipeline_mode = #tpu.pipeline_mode<synchronous>, transform_indices = @transform_1, window_bounds = array<i64: 1, 256>}, {pipeline_mode = #tpu.pipeline_mode<synchronous>, transform_indices = @transform_2, window_bounds = array<i64: 1, 256>}, {pipeline_mode = #tpu.pipeline_mode<synchronous>, transform_indices = @transform_3, window_bounds = array<i64: 1, 256>}, {pipeline_mode = #tpu.pipeline_mode<synchronous>, transform_indices = @transform_4, window_bounds = array<i64: 1, 256>}, {pipeline_mode = #tpu.pipeline_mode<synchronous>, transform_indices = @transform_5, window_bounds = array<i64: 256, 512>}, {pipeline_mode = #tpu.pipeline_mode<synchronous>, transform_indices = @transform_6, window_bounds = array<i64: 1, 512>}, {pipeline_mode = #tpu.pipeline_mode<synchronous>, transform_indices = @transform_7, window_bounds = array<i64: 1, 512>}, {pipeline_mode = #tpu.pipeline_mode<synchronous>, transform_indices = @transform_8, window_bounds = array<i64: 1, 512>}, {pipeline_mode = #tpu.pipeline_mode<synchronous>, transform_indices = @transform_9, window_bounds = array<i64: 512, 256>}, {pipeline_mode = #tpu.pipeline_mode<synchronous>, transform_indices = @transform_10, window_bounds = array<i64: 1, 256>}, {pipeline_mode = #tpu.pipeline_mode<synchronous>, transform_indices = @transform_11, window_bounds = array<i64: 1, 256>}, {pipeline_mode = #tpu.pipeline_mode<synchronous>, transform_indices = @transform_12, window_bounds = array<i64: 1, 256>}, {pipeline_mode = #tpu.pipeline_mode<synchronous>, transform_indices = @transform_13, window_bounds = array<i64: 256, 128>}, {pipeline_mode = #tpu.pipeline_mode<synchronous>, transform_indices = @transform_14, window_bounds = array<i64: 1, 128>}, {pipeline_mode = #tpu.pipeline_mode<synchronous>, transform_indices = @transform_15, window_bounds = array<i64: 1, 128>}, {pipeline_mode = #tpu.pipeline_mode<synchronous>, transform_indices = @transform_16, window_bounds = array<i64: 1, 128>}, {pipeline_mode = #tpu.pipeline_mode<synchronous>, transform_indices = @transform_17, window_bounds = array<i64: 1, 128>}, {pipeline_mode = #tpu.pipeline_mode<synchronous>, transform_indices = @transform_18, window_bounds = array<i64: 1, 128>}, {pipeline_mode = #tpu.pipeline_mode<synchronous>, transform_indices = @transform_19, window_bounds = array<i64: 1, 128>}, {transform_indices = @transform_20, window_bounds = array<i64: 8, 128>}]} {
    %c0 = arith.constant 0 : index
    %c0_0 = arith.constant 0 : index
    %0 = vector.load %arg1[%c0, %c0_0] : memref<8x1xf32, #tpu.memory_space<vmem>>, vector<8x1xf32>
    %c0_1 = arith.constant 0 : index
    %c0_2 = arith.constant 0 : index
    %1 = vector.load %arg2[%c0_1, %c0_2] : memref<1x256xf32, #tpu.memory_space<vmem>>, vector<1x256xf32>
    %2 = vector.broadcast %0 : vector<8x1xf32> to vector<8x256xf32>
    %3 = vector.broadcast %1 : vector<1x256xf32> to vector<8x256xf32>
    %4 = arith.mulf %2, %3 : vector<8x256xf32>
    %c0_3 = arith.constant 0 : index
    %c0_4 = arith.constant 0 : index
    %5 = vector.load %arg3[%c0_3, %c0_4] : memref<1x256xf32, #tpu.memory_space<vmem>>, vector<1x256xf32>
    %6 = vector.broadcast %5 : vector<1x256xf32> to vector<8x256xf32>
    %7 = arith.addf %4, %6 : vector<8x256xf32>
    %c0_5 = arith.constant 0 : index
    %c0_6 = arith.constant 0 : index
    %8 = vector.load %arg4[%c0_5, %c0_6] : memref<1x256xf32, #tpu.memory_space<vmem>>, vector<1x256xf32>
    %c0_7 = arith.constant 0 : index
    %c0_8 = arith.constant 0 : index
    %9 = vector.load %arg5[%c0_7, %c0_8] : memref<1x256xf32, #tpu.memory_space<vmem>>, vector<1x256xf32>
    %cst = arith.constant dense<0.000000e+00> : vector<8xf32>
    %10 = vector.multi_reduction <add>, %7, %cst [1] : vector<8x256xf32> to vector<8xf32>
    %11 = vector.shape_cast %10 : vector<8xf32> to vector<8x1xf32>
    %cst_9 = arith.constant 2.560000e+02 : f32
    %12 = vector.broadcast %cst_9 : f32 to vector<8x1xf32>
    %13 = arith.divf %11, %12 : vector<8x1xf32>
    %14 = vector.broadcast %13 : vector<8x1xf32> to vector<8x256xf32>
    %15 = arith.subf %7, %14 : vector<8x256xf32>
    %16 = arith.mulf %15, %15 : vector<8x256xf32>
    %cst_10 = arith.constant dense<0.000000e+00> : vector<8xf32>
    %17 = vector.multi_reduction <add>, %16, %cst_10 [1] : vector<8x256xf32> to vector<8xf32>
    %18 = vector.shape_cast %17 : vector<8xf32> to vector<8x1xf32>
    %cst_11 = arith.constant 2.560000e+02 : f32
    %19 = vector.broadcast %cst_11 : f32 to vector<8x1xf32>
    %20 = arith.divf %18, %19 : vector<8x1xf32>
    %cst_12 = arith.constant 9.99999974E-6 : f32
    %21 = vector.broadcast %cst_12 : f32 to vector<8x1xf32>
    %22 = arith.addf %20, %21 : vector<8x1xf32>
    %23 = math.rsqrt %22 : vector<8x1xf32>
    %24 = vector.broadcast %23 : vector<8x1xf32> to vector<8x256xf32>
    %25 = arith.mulf %15, %24 : vector<8x256xf32>
    %26 = vector.broadcast %8 : vector<1x256xf32> to vector<8x256xf32>
    %27 = arith.mulf %25, %26 : vector<8x256xf32>
    %28 = vector.broadcast %9 : vector<1x256xf32> to vector<8x256xf32>
    %29 = arith.addf %27, %28 : vector<8x256xf32>
    %cst_13 = arith.constant 0.000000e+00 : f32
    %30 = vector.broadcast %cst_13 : f32 to vector<8x256xf32>
    %31 = arith.maximumf %29, %30 : vector<8x256xf32>
    %32 = arith.truncf %31 : vector<8x256xf32> to vector<8x256xbf16>
    %c0_14 = arith.constant 0 : index
    %c0_15 = arith.constant 0 : index
    %33 = vector.load %arg6[%c0_14, %c0_15] : memref<256x512xbf16, #tpu.memory_space<vmem>>, vector<256x512xbf16>
    %cst_16 = arith.constant dense<0.000000e+00> : vector<8x512xf32>
    %34 = tpu.matmul %32, %33, %cst_16 {dimension_numbers = #tpu.dot_dimension_numbers<[1], [0], [0], [1], [0, 0, 1, 1], [], []>} : vector<8x256xbf16>, vector<256x512xbf16>, vector<8x512xf32> -> vector<8x512xf32>
    %c0_17 = arith.constant 0 : index
    %c0_18 = arith.constant 0 : index
    %35 = vector.load %arg7[%c0_17, %c0_18] : memref<1x512xf32, #tpu.memory_space<vmem>>, vector<1x512xf32>
    %36 = vector.broadcast %35 : vector<1x512xf32> to vector<8x512xf32>
    %37 = arith.addf %34, %36 : vector<8x512xf32>
    %c0_19 = arith.constant 0 : index
    %c0_20 = arith.constant 0 : index
    %38 = vector.load %arg8[%c0_19, %c0_20] : memref<1x512xf32, #tpu.memory_space<vmem>>, vector<1x512xf32>
    %c0_21 = arith.constant 0 : index
    %c0_22 = arith.constant 0 : index
    %39 = vector.load %arg9[%c0_21, %c0_22] : memref<1x512xf32, #tpu.memory_space<vmem>>, vector<1x512xf32>
    %cst_23 = arith.constant dense<0.000000e+00> : vector<8xf32>
    %40 = vector.multi_reduction <add>, %37, %cst_23 [1] : vector<8x512xf32> to vector<8xf32>
    %41 = vector.shape_cast %40 : vector<8xf32> to vector<8x1xf32>
    %cst_24 = arith.constant 5.120000e+02 : f32
    %42 = vector.broadcast %cst_24 : f32 to vector<8x1xf32>
    %43 = arith.divf %41, %42 : vector<8x1xf32>
    %44 = vector.broadcast %43 : vector<8x1xf32> to vector<8x512xf32>
    %45 = arith.subf %37, %44 : vector<8x512xf32>
    %46 = arith.mulf %45, %45 : vector<8x512xf32>
    %cst_25 = arith.constant dense<0.000000e+00> : vector<8xf32>
    %47 = vector.multi_reduction <add>, %46, %cst_25 [1] : vector<8x512xf32> to vector<8xf32>
    %48 = vector.shape_cast %47 : vector<8xf32> to vector<8x1xf32>
    %cst_26 = arith.constant 5.120000e+02 : f32
    %49 = vector.broadcast %cst_26 : f32 to vector<8x1xf32>
    %50 = arith.divf %48, %49 : vector<8x1xf32>
    %cst_27 = arith.constant 9.99999974E-6 : f32
    %51 = vector.broadcast %cst_27 : f32 to vector<8x1xf32>
    %52 = arith.addf %50, %51 : vector<8x1xf32>
    %53 = math.rsqrt %52 : vector<8x1xf32>
    %54 = vector.broadcast %53 : vector<8x1xf32> to vector<8x512xf32>
    %55 = arith.mulf %45, %54 : vector<8x512xf32>
    %56 = vector.broadcast %38 : vector<1x512xf32> to vector<8x512xf32>
    %57 = arith.mulf %55, %56 : vector<8x512xf32>
    %58 = vector.broadcast %39 : vector<1x512xf32> to vector<8x512xf32>
    %59 = arith.addf %57, %58 : vector<8x512xf32>
    %cst_28 = arith.constant 0.000000e+00 : f32
    %60 = vector.broadcast %cst_28 : f32 to vector<8x512xf32>
    %61 = arith.maximumf %59, %60 : vector<8x512xf32>
    %62 = arith.truncf %61 : vector<8x512xf32> to vector<8x512xbf16>
    %c0_29 = arith.constant 0 : index
    %c0_30 = arith.constant 0 : index
    %63 = vector.load %arg10[%c0_29, %c0_30] : memref<512x256xbf16, #tpu.memory_space<vmem>>, vector<512x256xbf16>
    %cst_31 = arith.constant dense<0.000000e+00> : vector<8x256xf32>
    %64 = tpu.matmul %62, %63, %cst_31 {dimension_numbers = #tpu.dot_dimension_numbers<[1], [0], [0], [1], [0, 0, 1, 1], [], []>} : vector<8x512xbf16>, vector<512x256xbf16>, vector<8x256xf32> -> vector<8x256xf32>
    %c0_32 = arith.constant 0 : index
    %c0_33 = arith.constant 0 : index
    %65 = vector.load %arg11[%c0_32, %c0_33] : memref<1x256xf32, #tpu.memory_space<vmem>>, vector<1x256xf32>
    %66 = vector.broadcast %65 : vector<1x256xf32> to vector<8x256xf32>
    %67 = arith.addf %64, %66 : vector<8x256xf32>
    %c0_34 = arith.constant 0 : index
    %c0_35 = arith.constant 0 : index
    %68 = vector.load %arg12[%c0_34, %c0_35] : memref<1x256xf32, #tpu.memory_space<vmem>>, vector<1x256xf32>
    %c0_36 = arith.constant 0 : index
    %c0_37 = arith.constant 0 : index
    %69 = vector.load %arg13[%c0_36, %c0_37] : memref<1x256xf32, #tpu.memory_space<vmem>>, vector<1x256xf32>
    %cst_38 = arith.constant dense<0.000000e+00> : vector<8xf32>
    %70 = vector.multi_reduction <add>, %67, %cst_38 [1] : vector<8x256xf32> to vector<8xf32>
    %71 = vector.shape_cast %70 : vector<8xf32> to vector<8x1xf32>
    %cst_39 = arith.constant 2.560000e+02 : f32
    %72 = vector.broadcast %cst_39 : f32 to vector<8x1xf32>
    %73 = arith.divf %71, %72 : vector<8x1xf32>
    %74 = vector.broadcast %73 : vector<8x1xf32> to vector<8x256xf32>
    %75 = arith.subf %67, %74 : vector<8x256xf32>
    %76 = arith.mulf %75, %75 : vector<8x256xf32>
    %cst_40 = arith.constant dense<0.000000e+00> : vector<8xf32>
    %77 = vector.multi_reduction <add>, %76, %cst_40 [1] : vector<8x256xf32> to vector<8xf32>
    %78 = vector.shape_cast %77 : vector<8xf32> to vector<8x1xf32>
    %cst_41 = arith.constant 2.560000e+02 : f32
    %79 = vector.broadcast %cst_41 : f32 to vector<8x1xf32>
    %80 = arith.divf %78, %79 : vector<8x1xf32>
    %cst_42 = arith.constant 9.99999974E-6 : f32
    %81 = vector.broadcast %cst_42 : f32 to vector<8x1xf32>
    %82 = arith.addf %80, %81 : vector<8x1xf32>
    %83 = math.rsqrt %82 : vector<8x1xf32>
    %84 = vector.broadcast %83 : vector<8x1xf32> to vector<8x256xf32>
    %85 = arith.mulf %75, %84 : vector<8x256xf32>
    %86 = vector.broadcast %68 : vector<1x256xf32> to vector<8x256xf32>
    %87 = arith.mulf %85, %86 : vector<8x256xf32>
    %88 = vector.broadcast %69 : vector<1x256xf32> to vector<8x256xf32>
    %89 = arith.addf %87, %88 : vector<8x256xf32>
    %cst_43 = arith.constant 0.000000e+00 : f32
    %90 = vector.broadcast %cst_43 : f32 to vector<8x256xf32>
    %91 = arith.maximumf %89, %90 : vector<8x256xf32>
    %92 = arith.truncf %91 : vector<8x256xf32> to vector<8x256xbf16>
    %c0_44 = arith.constant 0 : index
    %c0_45 = arith.constant 0 : index
    %93 = vector.load %arg14[%c0_44, %c0_45] : memref<256x128xbf16, #tpu.memory_space<vmem>>, vector<256x128xbf16>
    %cst_46 = arith.constant dense<0.000000e+00> : vector<8x128xf32>
    %94 = tpu.matmul %92, %93, %cst_46 {dimension_numbers = #tpu.dot_dimension_numbers<[1], [0], [0], [1], [0, 0, 1, 1], [], []>} : vector<8x256xbf16>, vector<256x128xbf16>, vector<8x128xf32> -> vector<8x128xf32>
    %c0_47 = arith.constant 0 : index
    %c0_48 = arith.constant 0 : index
    %95 = vector.load %arg15[%c0_47, %c0_48] : memref<1x128xf32, #tpu.memory_space<vmem>>, vector<1x128xf32>
    %96 = vector.broadcast %95 : vector<1x128xf32> to vector<8x128xf32>
    %97 = arith.addf %94, %96 : vector<8x128xf32>
    %c0_49 = arith.constant 0 : index
    %c0_50 = arith.constant 0 : index
    %98 = vector.load %arg16[%c0_49, %c0_50] : memref<1x128xf32, #tpu.memory_space<vmem>>, vector<1x128xf32>
    %c0_51 = arith.constant 0 : index
    %c0_52 = arith.constant 0 : index
    %99 = vector.load %arg17[%c0_51, %c0_52] : memref<1x128xf32, #tpu.memory_space<vmem>>, vector<1x128xf32>
    %100 = vector.broadcast %98 : vector<1x128xf32> to vector<8x128xf32>
    %101 = arith.maximumf %100, %97 : vector<8x128xf32>
    %102 = vector.broadcast %99 : vector<1x128xf32> to vector<8x128xf32>
    %103 = arith.minimumf %102, %101 : vector<8x128xf32>
    %104 = math.roundeven %103 : vector<8x128xf32>
    %105 = arith.negf %103 : vector<8x128xf32>
    %106 = math.exp %105 : vector<8x128xf32>
    %cst_53 = arith.constant 1.000000e+00 : f32
    %107 = vector.broadcast %cst_53 : f32 to vector<8x128xf32>
    %108 = arith.addf %107, %106 : vector<8x128xf32>
    %109 = arith.divf %107, %108 : vector<8x128xf32>
    %cst_54 = arith.constant 2.000000e+00 : f32
    %110 = vector.broadcast %cst_54 : f32 to vector<8x128xf32>
    %111 = arith.minimumf %103, %110 : vector<8x128xf32>
    %112 = math.exp %111 : vector<8x128xf32>
    %c0_55 = arith.constant 0 : index
    %c0_56 = arith.constant 0 : index
    %113 = vector.load %arg18[%c0_55, %c0_56] : memref<1x128xf32, #tpu.memory_space<vmem>>, vector<1x128xf32>
    %114 = vector.broadcast %113 : vector<1x128xf32> to vector<8x128xf32>
    %115 = arith.mulf %114, %104 : vector<8x128xf32>
    %c0_57 = arith.constant 0 : index
    %c0_58 = arith.constant 0 : index
    %116 = vector.load %arg19[%c0_57, %c0_58] : memref<1x128xf32, #tpu.memory_space<vmem>>, vector<1x128xf32>
    %117 = vector.broadcast %116 : vector<1x128xf32> to vector<8x128xf32>
    %118 = arith.mulf %117, %109 : vector<8x128xf32>
    %119 = arith.addf %115, %118 : vector<8x128xf32>
    %c0_59 = arith.constant 0 : index
    %c0_60 = arith.constant 0 : index
    %120 = vector.load %arg20[%c0_59, %c0_60] : memref<1x128xf32, #tpu.memory_space<vmem>>, vector<1x128xf32>
    %121 = vector.broadcast %120 : vector<1x128xf32> to vector<8x128xf32>
    %122 = arith.mulf %121, %112 : vector<8x128xf32>
    %123 = arith.addf %119, %122 : vector<8x128xf32>
    %c0_61 = arith.constant 0 : index
    %c0_62 = arith.constant 0 : index
    %124 = vector.load %arg21[%c0_61, %c0_62] : memref<8x128xf32, #tpu.memory_space<vmem>>, vector<8x128xf32>
    tpu.vector_store %arg21[%c0_61, %c0_62], %123 {strides = array<i32>} : memref<8x128xf32, #tpu.memory_space<vmem>>, vector<8x128xf32>,
    return
  }
  func.func @transform_0(%arg0: i32) -> (i32, i32) {
    %c0_i32 = arith.constant 0 : i32
    %c0_i32_0 = arith.constant 0 : i32
    return %arg0, %c0_i32 : i32, i32
  }
  func.func @transform_1(%arg0: i32) -> (i32, i32) {
    %c0_i32 = arith.constant 0 : i32
    %c0_i32_0 = arith.constant 0 : i32
    %c0_i32_1 = arith.constant 0 : i32
    return %c0_i32, %c0_i32_0 : i32, i32
  }
  func.func @transform_2(%arg0: i32) -> (i32, i32) {
    %c0_i32 = arith.constant 0 : i32
    %c0_i32_0 = arith.constant 0 : i32
    %c0_i32_1 = arith.constant 0 : i32
    return %c0_i32, %c0_i32_0 : i32, i32
  }
  func.func @transform_3(%arg0: i32) -> (i32, i32) {
    %c0_i32 = arith.constant 0 : i32
    %c0_i32_0 = arith.constant 0 : i32
    %c0_i32_1 = arith.constant 0 : i32
    return %c0_i32, %c0_i32_0 : i32, i32
  }
  func.func @transform_4(%arg0: i32) -> (i32, i32) {
    %c0_i32 = arith.constant 0 : i32
    %c0_i32_0 = arith.constant 0 : i32
    %c0_i32_1 = arith.constant 0 : i32
    return %c0_i32, %c0_i32_0 : i32, i32
  }
  func.func @transform_5(%arg0: i32) -> (i32, i32) {
    %c0_i32 = arith.constant 0 : i32
    %c0_i32_0 = arith.constant 0 : i32
    %c0_i32_1 = arith.constant 0 : i32
    return %c0_i32, %c0_i32_0 : i32, i32
  }
  func.func @transform_6(%arg0: i32) -> (i32, i32) {
    %c0_i32 = arith.constant 0 : i32
    %c0_i32_0 = arith.constant 0 : i32
    %c0_i32_1 = arith.constant 0 : i32
    return %c0_i32, %c0_i32_0 : i32, i32
  }
  func.func @transform_7(%arg0: i32) -> (i32, i32) {
    %c0_i32 = arith.constant 0 : i32
    %c0_i32_0 = arith.constant 0 : i32
    %c0_i32_1 = arith.constant 0 : i32
    return %c0_i32, %c0_i32_0 : i32, i32
  }
  func.func @transform_8(%arg0: i32) -> (i32, i32) {
    %c0_i32 = arith.constant 0 : i32
    %c0_i32_0 = arith.constant 0 : i32
    %c0_i32_1 = arith.constant 0 : i32
    return %c0_i32, %c0_i32_0 : i32, i32
  }
  func.func @transform_9(%arg0: i32) -> (i32, i32) {
    %c0_i32 = arith.constant 0 : i32
    %c0_i32_0 = arith.constant 0 : i32
    %c0_i32_1 = arith.constant 0 : i32
    return %c0_i32, %c0_i32_0 : i32, i32
  }
  func.func @transform_10(%arg0: i32) -> (i32, i32) {
    %c0_i32 = arith.constant 0 : i32
    %c0_i32_0 = arith.constant 0 : i32
    %c0_i32_1 = arith.constant 0 : i32
    return %c0_i32, %c0_i32_0 : i32, i32
  }
  func.func @transform_11(%arg0: i32) -> (i32, i32) {
    %c0_i32 = arith.constant 0 : i32
    %c0_i32_0 = arith.constant 0 : i32
    %c0_i32_1 = arith.constant 0 : i32
    return %c0_i32, %c0_i32_0 : i32, i32
  }
  func.func @transform_12(%arg0: i32) -> (i32, i32) {
    %c0_i32 = arith.constant 0 : i32
    %c0_i32_0 = arith.constant 0 : i32
    %c0_i32_1 = arith.constant 0 : i32
    return %c0_i32, %c0_i32_0 : i32, i32
  }
  func.func @transform_13(%arg0: i32) -> (i32, i32) {
    %c0_i32 = arith.constant 0 : i32
    %c0_i32_0 = arith.constant 0 : i32
    %c0_i32_1 = arith.constant 0 : i32
    return %c0_i32, %c0_i32_0 : i32, i32
  }
  func.func @transform_14(%arg0: i32) -> (i32, i32) {
    %c0_i32 = arith.constant 0 : i32
    %c0_i32_0 = arith.constant 0 : i32
    %c0_i32_1 = arith.constant 0 : i32
    return %c0_i32, %c0_i32_0 : i32, i32
  }
  func.func @transform_15(%arg0: i32) -> (i32, i32) {
    %c0_i32 = arith.constant 0 : i32
    %c0_i32_0 = arith.constant 0 : i32
    %c0_i32_1 = arith.constant 0 : i32
    return %c0_i32, %c0_i32_0 : i32, i32
  }
  func.func @transform_16(%arg0: i32) -> (i32, i32) {
    %c0_i32 = arith.constant 0 : i32
    %c0_i32_0 = arith.constant 0 : i32
    %c0_i32_1 = arith.constant 0 : i32
    return %c0_i32, %c0_i32_0 : i32, i32
  }
  func.func @transform_17(%arg0: i32) -> (i32, i32) {
    %c0_i32 = arith.constant 0 : i32
    %c0_i32_0 = arith.constant 0 : i32
    %c0_i32_1 = arith.constant 0 : i32
    return %c0_i32, %c0_i32_0 : i32, i32
  }
  func.func @transform_18(%arg0: i32) -> (i32, i32) {
    %c0_i32 = arith.constant 0 : i32
    %c0_i32_0 = arith.constant 0 : i32
    %c0_i32_1 = arith.constant 0 : i32
    return %c0_i32, %c0_i32_0 : i32, i32
  }
  func.func @transform_19(%arg0: i32) -> (i32, i32) {
    %c0_i32 = arith.constant 0 : i32
    %c0_i32_0 = arith.constant 0 : i32
    %c0_i32_1 = arith.constant 0 : i32
    return %c0_i32, %c0_i32_0 : i32, i32
  }
  func.func @transform_20(%arg0: i32) -> (i32, i32) {
    %c0_i32 = arith.constant 0 : i32
    %c0_i32_0 = arith.constant 0 : i32
    return %arg0, %c0_i32 : i32, i32
  }
}

</mosaic_0001>

<llo_original>
// kernel: _esn_forward.1
$region0: #{_esn_forward.1}
  #allocation0 [shape = 'u32[]', space=smem, size = 0x4, offset = 0x4, fixed_abs, tag = 'smem constant byte address 0x4 - core index']
  #allocation1 [shape = 'u32[144,128]{1,0:T(1,128)}', space=vmem, size = 0x12000, scoped, tag = 'internal scratch']
  %s0 = inlined_call_operand.vmem [shape: f32[8,1], index: 0, kind: input, shape index: {}]
  %s1 = inlined_call_operand.vmem [shape: f32[1,256], index: 1, kind: input, shape index: {}]
  %s2 = inlined_call_operand.vmem [shape: f32[1,256], index: 2, kind: input, shape index: {}]
  %s3 = inlined_call_operand.vmem [shape: f32[1,256], index: 3, kind: input, shape index: {}]
  %s4 = inlined_call_operand.vmem [shape: f32[1,256], index: 4, kind: input, shape index: {}]
  %s5 = inlined_call_operand.vmem [shape: bf16[256,512], index: 5, kind: input, shape index: {}]
  %s6 = inlined_call_operand.vmem [shape: f32[1,512], index: 6, kind: input, shape index: {}]
  %s7 = inlined_call_operand.vmem [shape: f32[1,512], index: 7, kind: input, shape index: {}]
  %s8 = inlined_call_operand.vmem [shape: f32[1,512], index: 8, kind: input, shape index: {}]
  %s9 = inlined_call_operand.vmem [shape: bf16[512,256], index: 9, kind: input, shape index: {}]
  %s10 = inlined_call_operand.vmem [shape: f32[1,256], index: 10, kind: input, shape index: {}]
  %s11 = inlined_call_operand.vmem [shape: f32[1,256], index: 11, kind: input, shape index: {}]
  %s12 = inlined_call_operand.vmem [shape: f32[1,256], index: 12, kind: input, shape index: {}]
  %s13 = inlined_call_operand.vmem [shape: bf16[256,128], index: 13, kind: input, shape index: {}]
  %s14 = inlined_call_operand.vmem [shape: f32[1,128], index: 14, kind: input, shape index: {}]
  %s15 = inlined_call_operand.vmem [shape: f32[1,128], index: 15, kind: input, shape index: {}]
  %s16 = inlined_call_operand.vmem [shape: f32[1,128], index: 16, kind: input, shape index: {}]
  %s17 = inlined_call_operand.vmem [shape: f32[1,128], index: 17, kind: input, shape index: {}]
  %s18 = inlined_call_operand.vmem [shape: f32[1,128], index: 18, kind: input, shape index: {}]
  %s19 = inlined_call_operand.vmem [shape: f32[1,128], index: 19, kind: input, shape index: {}]
  %s20 = inlined_call_operand.hbm [shape: f32[8,128], index: 20, kind: output, shape index: {}]
  %s21 = sld [smem:[#allocation0]]
  $region90: #{_esn_forward.1} parent=0
    _
  %s23 = ssub.s32 1, %s21
  %s24 = scalar_select 0, %s23, %s21
  $region1: #{_esn_forward.1} parent=0
    #allocation2 [shape = 'u8[4096]{0}', space=vmem, size = 0x1000, scoped, tag = 'output window, operand 0, single buffered']
    #allocation3 [shape = 's32[1]{0}', space=sflag, size = 0x4, scoped, tag = 'scoped memory for _esn_forward.1']
    %25 = vsyncpa [#allocation3], 0
    // Predicated region
    $region2: #{_esn_forward.1} parent=1 // pred_check
      _
    $region3: #{_esn_forward.1} parent=1 // pred_check_branch
      %27 = sbr.rel (0) target = $region5
    $region4: #{_esn_forward.1} parent=1 // pred_region
      _
    $region5: #{_esn_forward.1} parent=1 // pred_fallthru
      _
    // Predicated region
    $region6: #{_esn_forward.1} parent=1 // pred_check
      _
    $region7: #{_esn_forward.1} parent=1 // pred_check_branch
      %29 = sbr.rel (0) target = $region9
    $region8: #{_esn_forward.1} parent=1 // pred_region
      _
    $region9: #{_esn_forward.1} parent=1 // pred_fallthru
      _
    // Predicated region
    $region10: #{_esn_forward.1} parent=1 // pred_check
      _
    $region11: #{_esn_forward.1} parent=1 // pred_check_branch
      %31 = sbr.rel (0) target = $region13
    $region12: #{_esn_forward.1} parent=1 // pred_region
      _
    $region13: #{_esn_forward.1} parent=1 // pred_fallthru
      _
    // Predicated region
    $region14: #{_esn_forward.1} parent=1 // pred_check
      _
    $region15: #{_esn_forward.1} parent=1 // pred_check_branch
      %33 = sbr.rel (0) target = $region17
    $region16: #{_esn_forward.1} parent=1 // pred_region
      _
    $region17: #{_esn_forward.1} parent=1 // pred_fallthru
      _
    // Predicated region
    $region18: #{_esn_forward.1} parent=1 // pred_check
      _
    $region19: #{_esn_forward.1} parent=1 // pred_check_branch
      %35 = sbr.rel (0) target = $region21
    $region20: #{_esn_forward.1} parent=1 // pred_region
      _
    $region21: #{_esn_forward.1} parent=1 // pred_fallthru
      _
    // Predicated region
    $region22: #{_esn_forward.1} parent=1 // pred_check
      _
    $region23: #{_esn_forward.1} parent=1 // pred_check_branch
      %37 = sbr.rel (0) target = $region25
    $region24: #{_esn_forward.1} parent=1 // pred_region
      _
    $region25: #{_esn_forward.1} parent=1 // pred_fallthru
      _
    // Predicated region
    $region26: #{_esn_forward.1} parent=1 // pred_check
      _
    $region27: #{_esn_forward.1} parent=1 // pred_check_branch
      %39 = sbr.rel (0) target = $region29
    $region28: #{_esn_forward.1} parent=1 // pred_region
      _
    $region29: #{_esn_forward.1} parent=1 // pred_fallthru
      _
    // Predicated region
    $region30: #{_esn_forward.1} parent=1 // pred_check
      _
    $region31: #{_esn_forward.1} parent=1 // pred_check_branch
      %41 = sbr.rel (0) target = $region33
    $region32: #{_esn_forward.1} parent=1 // pred_region
      _
    $region33: #{_esn_forward.1} parent=1 // pred_fallthru
      _
    // Predicated region
    $region34: #{_esn_forward.1} parent=1 // pred_check
      _
    $region35: #{_esn_forward.1} parent=1 // pred_check_branch
      %43 = sbr.rel (0) target = $region37
    $region36: #{_esn_forward.1} parent=1 // pred_region
      _
    $region37: #{_esn_forward.1} parent=1 // pred_fallthru
      _
    // Predicated region
    $region38: #{_esn_forward.1} parent=1 // pred_check
      _
    $region39: #{_esn_forward.1} parent=1 // pred_check_branch
      %45 = sbr.rel (0) target = $region41
    $region40: #{_esn_forward.1} parent=1 // pred_region
      _
    $region41: #{_esn_forward.1} parent=1 // pred_fallthru
      _
    // Predicated region
    $region42: #{_esn_forward.1} parent=1 // pred_check
      _
    $region43: #{_esn_forward.1} parent=1 // pred_check_branch
      %47 = sbr.rel (0) target = $region45
    $region44: #{_esn_forward.1} parent=1 // pred_region
      _
    $region45: #{_esn_forward.1} parent=1 // pred_fallthru
      _
    // Predicated region
    $region46: #{_esn_forward.1} parent=1 // pred_check
      _
    $region47: #{_esn_forward.1} parent=1 // pred_check_branch
      %49 = sbr.rel (0) target = $region49
    $region48: #{_esn_forward.1} parent=1 // pred_region
      _
    $region49: #{_esn_forward.1} parent=1 // pred_fallthru
      _
    // Predicated region
    $region50: #{_esn_forward.1} parent=1 // pred_check
      _
    $region51: #{_esn_forward.1} parent=1 // pred_check_branch
      %51 = sbr.rel (0) target = $region53
    $region52: #{_esn_forward.1} parent=1 // pred_region
      _
    $region53: #{_esn_forward.1} parent=1 // pred_fallthru
      _
    // Predicated region
    $region54: #{_esn_forward.1} parent=1 // pred_check
      _
    $region55: #{_esn_forward.1} parent=1 // pred_check_branch
      %53 = sbr.rel (0) target = $region57
    $region56: #{_esn_forward.1} parent=1 // pred_region
      _
    $region57: #{_esn_forward.1} parent=1 // pred_fallthru
      _
    // Predicated region
    $region58: #{_esn_forward.1} parent=1 // pred_check
      _
    $region59: #{_esn_forward.1} parent=1 // pred_check_branch
      %55 = sbr.rel (0) target = $region61
    $region60: #{_esn_forward.1} parent=1 // pred_region
      _
    $region61: #{_esn_forward.1} parent=1 // pred_fallthru
      _
    // Predicated region
    $region62: #{_esn_forward.1} parent=1 // pred_check
      _
    $region63: #{_esn_forward.1} parent=1 // pred_check_branch
      %57 = sbr.rel (0) target = $region65
    $region64: #{_esn_forward.1} parent=1 // pred_region
      _
    $region65: #{_esn_forward.1} parent=1 // pred_fallthru
      _
    // Predicated region
    $region66: #{_esn_forward.1} parent=1 // pred_check
      _
    $region67: #{_esn_forward.1} parent=1 // pred_check_branch
      %59 = sbr.rel (0) target = $region69
    $region68: #{_esn_forward.1} parent=1 // pred_region
      _
    $region69: #{_esn_forward.1} parent=1 // pred_fallthru
      _
    // Predicated region
    $region70: #{_esn_forward.1} parent=1 // pred_check
      _
    $region71: #{_esn_forward.1} parent=1 // pred_check_branch
      %61 = sbr.rel (0) target = $region73
    $region72: #{_esn_forward.1} parent=1 // pred_region
      _
    $region73: #{_esn_forward.1} parent=1 // pred_fallthru
      _
    // Predicated region
    $region74: #{_esn_forward.1} parent=1 // pred_check
      _
    $region75: #{_esn_forward.1} parent=1 // pred_check_branch
      %63 = sbr.rel (0) target = $region77
    $region76: #{_esn_forward.1} parent=1 // pred_region
      _
    $region77: #{_esn_forward.1} parent=1 // pred_fallthru
      _
    // Predicated region
    $region78: #{_esn_forward.1} parent=1 // pred_check
      _
    $region79: #{_esn_forward.1} parent=1 // pred_check_branch
      %65 = sbr.rel (0) target = $region81
    $region80: #{_esn_forward.1} parent=1 // pred_region
      _
    $region81: #{_esn_forward.1} parent=1 // pred_fallthru
      _
    %v67 = vld [vmem:[%s0] sm:$0xff]
    %v68 = vld [vmem:[%s1] sm:$0x3]
    %70 = vset.pattern.permute.xlu0 0
    %71 = vperm.xlu0 %70, %v67
    %v72 = vpop.permute.xlu0 %71
    %v75 = vlaneseq
    %v76 = vshrl.u32 %v75, 7
    %v77 = vsub.s32 0, %v76
    %v78 = vrot.slane %v68, %v77
    %v79 = vlaneseq
    %v80 = vshrl.u32 %v79, 7
    %v81 = vsub.s32 1, %v80
    %v82 = vrot.slane %v68, %v81
    %v85 = vmul.f32 %v72, %v78
    %v86 = vmul.f32 %v72, %v82
    %v87 = vld [vmem:[%s2] sm:$0x3]
    %v89 = vlaneseq
    %v90 = vshrl.u32 %v89, 7
    %v91 = vsub.s32 0, %v90
    %v92 = vrot.slane %v87, %v91
    %v93 = vlaneseq
    %v94 = vshrl.u32 %v93, 7
    %v95 = vsub.s32 1, %v94
    %v96 = vrot.slane %v87, %v95
    %v99 = vadd.f32 %v85, %v92
    %v100 = vadd.f32 %v86, %v96
    %v101 = vld [vmem:[%s3] sm:$0x3]
    %v102 = vld [vmem:[%s4] sm:$0x3]
    %v103 = vadd.f32 %v99, %v100
    %104 = vadd.xlane.f32.xlu0 %v103
    %v105 = vpop.xlane.xlu0 %104
    %v106 = vrcp.pop 256.0
    %v107 = vmul.f32 %v105, %v106
    %v108 = vsub.f32 %v99, %v107
    %v109 = vsub.f32 %v100, %v107
    %v110 = vmul.f32 %v108, %v108
    %v111 = vmul.f32 %v109, %v109
    %v112 = vadd.f32 %v110, %v111
    %113 = vadd.xlane.f32.xlu0 %v112
    %v114 = vpop.xlane.xlu0 %113
    %v115 = vmul.f32 %v114, %v106
    %v116 = vadd.f32 %v115, 1e-05
    %v117 = vrsqrt.pop %v116
    %v118 = vmul.f32 %v108, %v117
    %v119 = vmul.f32 %v109, %v117
    %v121 = vlaneseq
    %v122 = vshrl.u32 %v121, 7
    %v123 = vsub.s32 0, %v122
    %v124 = vrot.slane %v101, %v123
    %v125 = vlaneseq
    %v126 = vshrl.u32 %v125, 7
    %v127 = vsub.s32 1, %v126
    %v128 = vrot.slane %v101, %v127
    %v131 = vmul.f32 %v118, %v124
    %v132 = vmul.f32 %v119, %v128
    %v134 = vlaneseq
    %v135 = vshrl.u32 %v134, 7
    %v136 = vsub.s32 0, %v135
    %v137 = vrot.slane %v102, %v136
    %v138 = vlaneseq
    %v139 = vshrl.u32 %v138, 7
    %v140 = vsub.s32 1, %v139
    %v141 = vrot.slane %v102, %v140
    %v144 = vadd.f32 %v131, %v137
    %v145 = vadd.f32 %v132, %v141
    %v146 = vmax.f32 %v144, 0.0
    %v147 = vmax.f32 %v145, 0.0
    %v148 = vpack.c.bf16 %v146, %v146
    %v149 = vpack.c.bf16 %v147, %v147
    %v150 = vld [vmem:[%s5] sm:$0xff]
    %v151 = vld [vmem:[%s5 + $0x8] sm:$0xff]
    %v152 = vld [vmem:[%s5 + $0x10] sm:$0xff]
    %v153 = vld [vmem:[%s5 + $0x18] sm:$0xff]
    %v154 = vld [vmem:[%s5 + $0x20] sm:$0xff]
    %v155 = vld [vmem:[%s5 + $0x28] sm:$0xff]
    %v156 = vld [vmem:[%s5 + $0x30] sm:$0xff]
    %v157 = vld [vmem:[%s5 + $0x38] sm:$0xff]
    %v158 = vld [vmem:[%s5 + $0x40] sm:$0xff]
    %v159 = vld [vmem:[%s5 + $0x48] sm:$0xff]
    %v160 = vld [vmem:[%s5 + $0x50] sm:$0xff]
    %v161 = vld [vmem:[%s5 + $0x58] sm:$0xff]
    %v162 = vld [vmem:[%s5 + $0x60] sm:$0xff]
    %v163 = vld [vmem:[%s5 + $0x68] sm:$0xff]
    %v164 = vld [vmem:[%s5 + $0x70] sm:$0xff]
    %v165 = vld [vmem:[%s5 + $0x78] sm:$0xff]
    %v166 = vld [vmem:[%s5 + $0x80] sm:$0xff]
    %v167 = vld [vmem:[%s5 + $0x88] sm:$0xff]
    %v168 = vld [vmem:[%s5 + $0x90] sm:$0xff]
    %v169 = vld [vmem:[%s5 + $0x98] sm:$0xff]
    %v170 = vld [vmem:[%s5 + $0xa0] sm:$0xff]
    %v171 = vld [vmem:[%s5 + $0xa8] sm:$0xff]
    %v172 = vld [vmem:[%s5 + $0xb0] sm:$0xff]
    %v173 = vld [vmem:[%s5 + $0xb8] sm:$0xff]
    %v174 = vld [vmem:[%s5 + $0xc0] sm:$0xff]
    %v175 = vld [vmem:[%s5 + $0xc8] sm:$0xff]
    %v176 = vld [vmem:[%s5 + $0xd0] sm:$0xff]
    %v177 = vld [vmem:[%s5 + $0xd8] sm:$0xff]
    %v178 = vld [vmem:[%s5 + $0xe0] sm:$0xff]
    %v179 = vld [vmem:[%s5 + $0xe8] sm:$0xff]
    %v180 = vld [vmem:[%s5 + $0xf0] sm:$0xff]
    %v181 = vld [vmem:[%s5 + $0xf8] sm:$0xff]
    %v182 = vld [vmem:[%s5 + $0x100] sm:$0xff]
    %v183 = vld [vmem:[%s5 + $0x108] sm:$0xff]
    %v184 = vld [vmem:[%s5 + $0x110] sm:$0xff]
    %v185 = vld [vmem:[%s5 + $0x118] sm:$0xff]
    %v186 = vld [vmem:[%s5 + $0x120] sm:$0xff]
    %v187 = vld [vmem:[%s5 + $0x128] sm:$0xff]
    %v188 = vld [vmem:[%s5 + $0x130] sm:$0xff]
    %v189 = vld [vmem:[%s5 + $0x138] sm:$0xff]
    %v190 = vld [vmem:[%s5 + $0x140] sm:$0xff]
    %v191 = vld [vmem:[%s5 + $0x148] sm:$0xff]
    %v192 = vld [vmem:[%s5 + $0x150] sm:$0xff]
    %v193 = vld [vmem:[%s5 + $0x158] sm:$0xff]
    %v194 = vld [vmem:[%s5 + $0x160] sm:$0xff]
    %v195 = vld [vmem:[%s5 + $0x168] sm:$0xff]
    %v196 = vld [vmem:[%s5 + $0x170] sm:$0xff]
    %v197 = vld [vmem:[%s5 + $0x178] sm:$0xff]
    %v198 = vld [vmem:[%s5 + $0x180] sm:$0xff]
    %v199 = vld [vmem:[%s5 + $0x188] sm:$0xff]
    %v200 = vld [vmem:[%s5 + $0x190] sm:$0xff]
    %v201 = vld [vmem:[%s5 + $0x198] sm:$0xff]
    %v202 = vld [vmem:[%s5 + $0x1a0] sm:$0xff]
    %v203 = vld [vmem:[%s5 + $0x1a8] sm:$0xff]
    %v204 = vld [vmem:[%s5 + $0x1b0] sm:$0xff]
    %v205 = vld [vmem:[%s5 + $0x1b8] sm:$0xff]
    %v206 = vld [vmem:[%s5 + $0x1c0] sm:$0xff]
    %v207 = vld [vmem:[%s5 + $0x1c8] sm:$0xff]
    %v208 = vld [vmem:[%s5 + $0x1d0] sm:$0xff]
    %v209 = vld [vmem:[%s5 + $0x1d8] sm:$0xff]
    %v210 = vld [vmem:[%s5 + $0x1e0] sm:$0xff]
    %v211 = vld [vmem:[%s5 + $0x1e8] sm:$0xff]
    %v212 = vld [vmem:[%s5 + $0x1f0] sm:$0xff]
    %v213 = vld [vmem:[%s5 + $0x1f8] sm:$0xff]
    %v214 = vld [vmem:[%s6] sm:$0xf]
    %v216 = vlaneseq
    %v217 = vshrl.u32 %v216, 7
    %v218 = vsub.s32 0, %v217
    %v219 = vrot.slane %v214, %v218
    %v220 = vlaneseq
    %v221 = vshrl.u32 %v220, 7
    %v222 = vsub.s32 1, %v221
    %v223 = vrot.slane %v214, %v222
    %v224 = vlaneseq
    %v225 = vshrl.u32 %v224, 7
    %v226 = vsub.s32 2, %v225
    %v227 = vrot.slane %v214, %v226
    %v228 = vlaneseq
    %v229 = vshrl.u32 %v228, 7
    %v230 = vsub.s32 3, %v229
    %v231 = vrot.slane %v214, %v230
    %v300 = vunpack.c.l.b16 %v150
    %v301 = vunpack.c.h.b16 %v150
    %v302 = vunpack.c.l.b16 %v151
    %v303 = vunpack.c.h.b16 %v151
    %v304 = vunpack.c.l.b16 %v152
    %v305 = vunpack.c.h.b16 %v152
    %v306 = vunpack.c.l.b16 %v153
    %v307 = vunpack.c.h.b16 %v153
    %v308 = vunpack.c.l.b16 %v154
    %v309 = vunpack.c.h.b16 %v154
    %v310 = vunpack.c.l.b16 %v155
    %v311 = vunpack.c.h.b16 %v155
    %v312 = vunpack.c.l.b16 %v156
    %v313 = vunpack.c.h.b16 %v156
    %v314 = vunpack.c.l.b16 %v157
    %v315 = vunpack.c.h.b16 %v157
    %v316 = vunpack.c.l.b16 %v158
    %v317 = vunpack.c.h.b16 %v158
    %v318 = vunpack.c.l.b16 %v159
    %v319 = vunpack.c.h.b16 %v159
    %v320 = vunpack.c.l.b16 %v160
    %v321 = vunpack.c.h.b16 %v160
    %v322 = vunpack.c.l.b16 %v161
    %v323 = vunpack.c.h.b16 %v161
    %v324 = vunpack.c.l.b16 %v162
    %v325 = vunpack.c.h.b16 %v162
    %v326 = vunpack.c.l.b16 %v163
    %v327 = vunpack.c.h.b16 %v163
    %v328 = vunpack.c.l.b16 %v164
    %v329 = vunpack.c.h.b16 %v164
    %v330 = vunpack.c.l.b16 %v165
    %v331 = vunpack.c.h.b16 %v165
    %v332 = vunpack.c.l.b16 %v166
    %v333 = vunpack.c.h.b16 %v166
    %v334 = vunpack.c.l.b16 %v167
    %v335 = vunpack.c.h.b16 %v167
    %v336 = vunpack.c.l.b16 %v168
    %v337 = vunpack.c.h.b16 %v168
    %v338 = vunpack.c.l.b16 %v169
    %v339 = vunpack.c.h.b16 %v169
    %v340 = vunpack.c.l.b16 %v170
    %v341 = vunpack.c.h.b16 %v170
    %v342 = vunpack.c.l.b16 %v171
    %v343 = vunpack.c.h.b16 %v171
    %v344 = vunpack.c.l.b16 %v172
    %v345 = vunpack.c.h.b16 %v172
    %v346 = vunpack.c.l.b16 %v173
    %v347 = vunpack.c.h.b16 %v173
    %v348 = vunpack.c.l.b16 %v174
    %v349 = vunpack.c.h.b16 %v174
    %v350 = vunpack.c.l.b16 %v175
    %v351 = vunpack.c.h.b16 %v175
    %v352 = vunpack.c.l.b16 %v176
    %v353 = vunpack.c.h.b16 %v176
    %v354 = vunpack.c.l.b16 %v177
    %v355 = vunpack.c.h.b16 %v177
    %v356 = vunpack.c.l.b16 %v178
    %v357 = vunpack.c.h.b16 %v178
    %v358 = vunpack.c.l.b16 %v179
    %v359 = vunpack.c.h.b16 %v179
    %v360 = vunpack.c.l.b16 %v180
    %v361 = vunpack.c.h.b16 %v180
    %v362 = vunpack.c.l.b16 %v181
    %v363 = vunpack.c.h.b16 %v181
    %v364 = vunpack.c.l.b16 %v182
    %v365 = vunpack.c.h.b16 %v182
    %v366 = vunpack.c.l.b16 %v183
    %v367 = vunpack.c.h.b16 %v183
    %v368 = vunpack.c.l.b16 %v184
    %v369 = vunpack.c.h.b16 %v184
    %v370 = vunpack.c.l.b16 %v185
    %v371 = vunpack.c.h.b16 %v185
    %v372 = vunpack.c.l.b16 %v186
    %v373 = vunpack.c.h.b16 %v186
    %v374 = vunpack.c.l.b16 %v187
    %v375 = vunpack.c.h.b16 %v187
    %v376 = vunpack.c.l.b16 %v188
    %v377 = vunpack.c.h.b16 %v188
    %v378 = vunpack.c.l.b16 %v189
    %v379 = vunpack.c.h.b16 %v189
    %v380 = vunpack.c.l.b16 %v190
    %v381 = vunpack.c.h.b16 %v190
    %v382 = vunpack.c.l.b16 %v191
    %v383 = vunpack.c.h.b16 %v191
    %v384 = vunpack.c.l.b16 %v192
    %v385 = vunpack.c.h.b16 %v192
    %v386 = vunpack.c.l.b16 %v193
    %v387 = vunpack.c.h.b16 %v193
    %v388 = vunpack.c.l.b16 %v194
    %v389 = vunpack.c.h.b16 %v194
    %v390 = vunpack.c.l.b16 %v195
    %v391 = vunpack.c.h.b16 %v195
    %v392 = vunpack.c.l.b16 %v196
    %v393 = vunpack.c.h.b16 %v196
    %v394 = vunpack.c.l.b16 %v197
    %v395 = vunpack.c.h.b16 %v197
    %v396 = vunpack.c.l.b16 %v198
    %v397 = vunpack.c.h.b16 %v198
    %v398 = vunpack.c.l.b16 %v199
    %v399 = vunpack.c.h.b16 %v199
    %v400 = vunpack.c.l.b16 %v200
    %v401 = vunpack.c.h.b16 %v200
    %v402 = vunpack.c.l.b16 %v201
    %v403 = vunpack.c.h.b16 %v201
    %v404 = vunpack.c.l.b16 %v202
    %v405 = vunpack.c.h.b16 %v202
    %v406 = vunpack.c.l.b16 %v203
    %v407 = vunpack.c.h.b16 %v203
    %v408 = vunpack.c.l.b16 %v204
    %v409 = vunpack.c.h.b16 %v204
    %v410 = vunpack.c.l.b16 %v205
    %v411 = vunpack.c.h.b16 %v205
    %v412 = vunpack.c.l.b16 %v206
    %v413 = vunpack.c.h.b16 %v206
    %v414 = vunpack.c.l.b16 %v207
    %v415 = vunpack.c.h.b16 %v207
    %v416 = vunpack.c.l.b16 %v208
    %v417 = vunpack.c.h.b16 %v208
    %v418 = vunpack.c.l.b16 %v209
    %v419 = vunpack.c.h.b16 %v209
    %v420 = vunpack.c.l.b16 %v210
    %v421 = vunpack.c.h.b16 %v210
    %v422 = vunpack.c.l.b16 %v211
    %v423 = vunpack.c.h.b16 %v211
    %v424 = vunpack.c.l.b16 %v212
    %v425 = vunpack.c.h.b16 %v212
    %v426 = vunpack.c.l.b16 %v213
    %v427 = vunpack.c.h.b16 %v213
    %v428 = vpack.c.b16 %v304, %v300
    %v429 = vpack.c.b16 %v305, %v301
    %v430 = vpack.c.b16 %v306, %v302
    %v431 = vpack.c.b16 %v307, %v303
    %v432 = vpack.c.b16 %v312, %v308
    %v433 = vpack.c.b16 %v313, %v309
    %v434 = vpack.c.b16 %v314, %v310
    %v435 = vpack.c.b16 %v315, %v311
    %v436 = vpack.c.b16 %v320, %v316
    %v437 = vpack.c.b16 %v321, %v317
    %v438 = vpack.c.b16 %v322, %v318
    %v439 = vpack.c.b16 %v323, %v319
    %v440 = vpack.c.b16 %v328, %v324
    %v441 = vpack.c.b16 %v329, %v325
    %v442 = vpack.c.b16 %v330, %v326
    %v443 = vpack.c.b16 %v331, %v327
    %v444 = vpack.c.b16 %v336, %v332
    %v445 = vpack.c.b16 %v337, %v333
    %v446 = vpack.c.b16 %v338, %v334
    %v447 = vpack.c.b16 %v339, %v335
    %v448 = vpack.c.b16 %v344, %v340
    %v449 = vpack.c.b16 %v345, %v341
    %v450 = vpack.c.b16 %v346, %v342
    %v451 = vpack.c.b16 %v347, %v343
    %v452 = vpack.c.b16 %v352, %v348
    %v453 = vpack.c.b16 %v353, %v349
    %v454 = vpack.c.b16 %v354, %v350
    %v455 = vpack.c.b16 %v355, %v351
    %v456 = vpack.c.b16 %v360, %v356
    %v457 = vpack.c.b16 %v361, %v357
    %v458 = vpack.c.b16 %v362, %v358
    %v459 = vpack.c.b16 %v363, %v359
    %v460 = vpack.c.b16 %v368, %v364
    %v461 = vpack.c.b16 %v369, %v365
    %v462 = vpack.c.b16 %v370, %v366
    %v463 = vpack.c.b16 %v371, %v367
    %v464 = vpack.c.b16 %v376, %v372
    %v465 = vpack.c.b16 %v377, %v373
    %v466 = vpack.c.b16 %v378, %v374
    %v467 = vpack.c.b16 %v379, %v375
    %v468 = vpack.c.b16 %v384, %v380
    %v469 = vpack.c.b16 %v385, %v381
    %v470 = vpack.c.b16 %v386, %v382
    %v471 = vpack.c.b16 %v387, %v383
    %v472 = vpack.c.b16 %v392, %v388
    %v473 = vpack.c.b16 %v393, %v389
    %v474 = vpack.c.b16 %v394, %v390
    %v475 = vpack.c.b16 %v395, %v391
    %v476 = vpack.c.b16 %v400, %v396
    %v477 = vpack.c.b16 %v401, %v397
    %v478 = vpack.c.b16 %v402, %v398
    %v479 = vpack.c.b16 %v403, %v399
    %v480 = vpack.c.b16 %v408, %v404
    %v481 = vpack.c.b16 %v409, %v405
    %v482 = vpack.c.b16 %v410, %v406
    %v483 = vpack.c.b16 %v411, %v407
    %v484 = vpack.c.b16 %v416, %v412
    %v485 = vpack.c.b16 %v417, %v413
    %v486 = vpack.c.b16 %v418, %v414
    %v487 = vpack.c.b16 %v419, %v415
    %v488 = vpack.c.b16 %v424, %v420
    %v489 = vpack.c.b16 %v425, %v421
    %v490 = vpack.c.b16 %v426, %v422
    %v491 = vpack.c.b16 %v427, %v423
    %556 = vmatprep.subr.bf16.mxu0 %v457
    %557 = vmatpush1.bf16.msra.mxu0 %v456
    %558 = vmatprep.subr.bf16.mxu0 %v453
    %559 = vmatpush1.bf16.msra.mxu0 %v452
    %560 = vmatprep.subr.bf16.mxu0 %v449
    %561 = vmatpush1.bf16.msra.mxu0 %v448
    %562 = vmatprep.subr.bf16.mxu0 %v445
    %563 = vmatpush1.bf16.msra.mxu0 %v444
    %564 = vmatprep.subr.bf16.mxu0 %v441
    %565 = vmatpush1.bf16.msra.mxu0 %v440
    %566 = vmatprep.subr.bf16.mxu0 %v437
    %567 = vmatpush1.bf16.msra.mxu0 %v436
    %568 = vmatprep.subr.bf16.mxu0 %v433
    %569 = vmatpush1.bf16.msra.mxu0 %v432
    %570 = vmatprep.subr.bf16.mxu0 %v429
    %571 = vmatpush1.bf16.msra.mxu0 %v428
    %572 = vmatprep.subr.bf16.mxu0 %v489
    %573 = vmatpush2.bf16.msra.mxu0 %v488
    %574 = vmatprep.subr.bf16.mxu0 %v485
    %575 = vmatpush2.bf16.msra.mxu0 %v484
    %576 = vmatprep.subr.bf16.mxu0 %v481
    %577 = vmatpush2.bf16.msra.mxu0 %v480
    %578 = vmatprep.subr.bf16.mxu0 %v477
    %579 = vmatpush2.bf16.msra.mxu0 %v476
    %580 = vmatprep.subr.bf16.mxu0 %v473
    %581 = vmatpush2.bf16.msra.mxu0 %v472
    %582 = vmatprep.subr.bf16.mxu0 %v469
    %583 = vmatpush2.bf16.msra.mxu0 %v468
    %584 = vmatprep.subr.bf16.mxu0 %v465
    %585 = vmatpush2.bf16.msra.mxu0 %v464
    %586 = vmatprep.subr.bf16.mxu0 %v461
    %587 = vmatpush2.bf16.msra.mxu0 %v460
    %588 = vmatprep.mubr.bf16.mxu0 %v149
    %589 = vmatmul.mubr.bf16.gmra.mxu0 %v148
    %v590 = vpop.f32.mrf.mxu0
    %v591 = vadd.f32 %v219, %v590
    %v592 = vpop.f32.mrf.mxu0
    %v593 = vadd.f32 %v223, %v592
    %v594 = vpop.f32.mrf.mxu0
    %v595 = vpop.f32.mrf.mxu0
    %596 = vdwg.mxu0
    %597 = vmatprep.subr.bf16.mxu0 %v459
    %598 = vmatpush1.bf16.msra.mxu0 %v458
    %599 = vmatprep.subr.bf16.mxu0 %v455
    %600 = vmatpush1.bf16.msra.mxu0 %v454
    %601 = vmatprep.subr.bf16.mxu0 %v451
    %602 = vmatpush1.bf16.msra.mxu0 %v450
    %603 = vmatprep.subr.bf16.mxu0 %v447
    %604 = vmatpush1.bf16.msra.mxu0 %v446
    %605 = vmatprep.subr.bf16.mxu0 %v443
    %606 = vmatpush1.bf16.msra.mxu0 %v442
    %607 = vmatprep.subr.bf16.mxu0 %v439
    %608 = vmatpush1.bf16.msra.mxu0 %v438
    %609 = vmatprep.subr.bf16.mxu0 %v435
    %610 = vmatpush1.bf16.msra.mxu0 %v434
    %611 = vmatprep.subr.bf16.mxu0 %v431
    %612 = vmatpush1.bf16.msra.mxu0 %v430
    %613 = vmatprep.subr.bf16.mxu0 %v491
    %614 = vmatpush2.bf16.msra.mxu0 %v490
    %615 = vmatprep.subr.bf16.mxu0 %v487
    %616 = vmatpush2.bf16.msra.mxu0 %v486
    %617 = vmatprep.subr.bf16.mxu0 %v483
    %618 = vmatpush2.bf16.msra.mxu0 %v482
    %619 = vmatprep.subr.bf16.mxu0 %v479
    %620 = vmatpush2.bf16.msra.mxu0 %v478
    %621 = vmatprep.subr.bf16.mxu0 %v475
    %622 = vmatpush2.bf16.msra.mxu0 %v474
    %623 = vmatprep.subr.bf16.mxu0 %v471
    %624 = vmatpush2.bf16.msra.mxu0 %v470
    %625 = vmatprep.subr.bf16.mxu0 %v467
    %626 = vmatpush2.bf16.msra.mxu0 %v466
    %627 = vmatprep.subr.bf16.mxu0 %v463
    %628 = vmatpush2.bf16.msra.mxu0 %v462
    %629 = vmatprep.mubr.bf16.mxu0 %v149
    %630 = vmatmul.mubr.bf16.gmra.mxu0 %v148
    %v631 = vpop.f32.mrf.mxu0
    %v632 = vadd.f32 %v227, %v631
    %v633 = vpop.f32.mrf.mxu0
    %v634 = vadd.f32 %v231, %v633
    %v635 = vpop.f32.mrf.mxu0
    %v636 = vpop.f32.mrf.mxu0
    %637 = vdwg.mxu0
    %v638 = vld [vmem:[%s7] sm:$0xf]
    %v639 = vld [vmem:[%s8] sm:$0xf]
    %v640 = vadd.f32 %v591, %v593
    %v641 = vadd.f32 %v640, %v632
    %v642 = vadd.f32 %v641, %v634
    %643 = vadd.xlane.f32.xlu0 %v642
    %v644 = vpop.xlane.xlu0 %643
    %v645 = vrcp.pop 512.0
    %v646 = vmul.f32 %v644, %v645
    %v647 = vsub.f32 %v591, %v646
    %v648 = vsub.f32 %v593, %v646
    %v649 = vsub.f32 %v632, %v646
    %v650 = vsub.f32 %v634, %v646
    %v651 = vmul.f32 %v647, %v647
    %v652 = vmul.f32 %v648, %v648
    %v653 = vmul.f32 %v649, %v649
    %v654 = vmul.f32 %v650, %v650
    %v655 = vadd.f32 %v651, %v652
    %v656 = vadd.f32 %v655, %v653
    %v657 = vadd.f32 %v656, %v654
    %658 = vadd.xlane.f32.xlu0 %v657
    %v659 = vpop.xlane.xlu0 %658
    %v660 = vmul.f32 %v659, %v645
    %v661 = vadd.f32 %v660, 1e-05
    %v662 = vrsqrt.pop %v661
    %v663 = vmul.f32 %v647, %v662
    %v664 = vmul.f32 %v648, %v662
    %v665 = vmul.f32 %v649, %v662
    %v666 = vmul.f32 %v650, %v662
    %v668 = vlaneseq
    %v669 = vshrl.u32 %v668, 7
    %v670 = vsub.s32 0, %v669
    %v671 = vrot.slane %v638, %v670
    %v672 = vlaneseq
    %v673 = vshrl.u32 %v672, 7
    %v674 = vsub.s32 1, %v673
    %v675 = vrot.slane %v638, %v674
    %v676 = vlaneseq
    %v677 = vshrl.u32 %v676, 7
    %v678 = vsub.s32 2, %v677
    %v679 = vrot.slane %v638, %v678
    %v680 = vlaneseq
    %v681 = vshrl.u32 %v680, 7
    %v682 = vsub.s32 3, %v681
    %v683 = vrot.slane %v638, %v682
    %v688 = vmul.f32 %v663, %v671
    %v689 = vmul.f32 %v664, %v675
    %v690 = vmul.f32 %v665, %v679
    %v691 = vmul.f32 %v666, %v683
    %v693 = vlaneseq
    %v694 = vshrl.u32 %v693, 7
    %v695 = vsub.s32 0, %v694
    %v696 = vrot.slane %v639, %v695
    %v697 = vlaneseq
    %v698 = vshrl.u32 %v697, 7
    %v699 = vsub.s32 1, %v698
    %v700 = vrot.slane %v639, %v699
    %v701 = vlaneseq
    %v702 = vshrl.u32 %v701, 7
    %v703 = vsub.s32 2, %v702
    %v704 = vrot.slane %v639, %v703
    %v705 = vlaneseq
    %v706 = vshrl.u32 %v705, 7
    %v707 = vsub.s32 3, %v706
    %v708 = vrot.slane %v639, %v707
    %v713 = vadd.f32 %v688, %v696
    %v714 = vadd.f32 %v689, %v700
    %v715 = vadd.f32 %v690, %v704
    %v716 = vadd.f32 %v691, %v708
    %v717 = vmax.f32 %v713, 0.0
    %v718 = vmax.f32 %v714, 0.0
    %v719 = vmax.f32 %v715, 0.0
    %v720 = vmax.f32 %v716, 0.0
    %v721 = vpack.c.bf16 %v717, %v717
    %v722 = vpack.c.bf16 %v718, %v718
    %v723 = vpack.c.bf16 %v719, %v719
    %v724 = vpack.c.bf16 %v720, %v720
    %v725 = vld [vmem:[%s9] sm:$0xff]
    %v726 = vld [vmem:[%s9 + $0x8] sm:$0xff]
    %v727 = vld [vmem:[%s9 + $0x10] sm:$0xff]
    %v728 = vld [vmem:[%s9 + $0x18] sm:$0xff]
    %v729 = vld [vmem:[%s9 + $0x20] sm:$0xff]
    %v730 = vld [vmem:[%s9 + $0x28] sm:$0xff]
    %v731 = vld [vmem:[%s9 + $0x30] sm:$0xff]
    %v732 = vld [vmem:[%s9 + $0x38] sm:$0xff]
    %v733 = vld [vmem:[%s9 + $0x40] sm:$0xff]
    %v734 = vld [vmem:[%s9 + $0x48] sm:$0xff]
    %v735 = vld [vmem:[%s9 + $0x50] sm:$0xff]
    %v736 = vld [vmem:[%s9 + $0x58] sm:$0xff]
    %v737 = vld [vmem:[%s9 + $0x60] sm:$0xff]
    %v738 = vld [vmem:[%s9 + $0x68] sm:$0xff]
    %v739 = vld [vmem:[%s9 + $0x70] sm:$0xff]
    %v740 = vld [vmem:[%s9 + $0x78] sm:$0xff]
    %v741 = vld [vmem:[%s9 + $0x80] sm:$0xff]
    %v742 = vld [vmem:[%s9 + $0x88] sm:$0xff]
    %v743 = vld [vmem:[%s9 + $0x90] sm:$0xff]
    %v744 = vld [vmem:[%s9 + $0x98] sm:$0xff]
    %v745 = vld [vmem:[%s9 + $0xa0] sm:$0xff]
    %v746 = vld [vmem:[%s9 + $0xa8] sm:$0xff]
    %v747 = vld [vmem:[%s9 + $0xb0] sm:$0xff]
    %v748 = vld [vmem:[%s9 + $0xb8] sm:$0xff]
    %v749 = vld [vmem:[%s9 + $0xc0] sm:$0xff]
    %v750 = vld [vmem:[%s9 + $0xc8] sm:$0xff]
    %v751 = vld [vmem:[%s9 + $0xd0] sm:$0xff]
    %v752 = vld [vmem:[%s9 + $0xd8] sm:$0xff]
    %v753 = vld [vmem:[%s9 + $0xe0] sm:$0xff]
    %v754 = vld [vmem:[%s9 + $0xe8] sm:$0xff]
    %v755 = vld [vmem:[%s9 + $0xf0] sm:$0xff]
    %v756 = vld [vmem:[%s9 + $0xf8] sm:$0xff]
    %v757 = vld [vmem:[%s9 + $0x100] sm:$0xff]
    %v758 = vld [vmem:[%s9 + $0x108] sm:$0xff]
    %v759 = vld [vmem:[%s9 + $0x110] sm:$0xff]
    %v760 = vld [vmem:[%s9 + $0x118] sm:$0xff]
    %v761 = vld [vmem:[%s9 + $0x120] sm:$0xff]
    %v762 = vld [vmem:[%s9 + $0x128] sm:$0xff]
    %v763 = vld [vmem:[%s9 + $0x130] sm:$0xff]
    %v764 = vld [vmem:[%s9 + $0x138] sm:$0xff]
    %v765 = vld [vmem:[%s9 + $0x140] sm:$0xff]
    %v766 = vld [vmem:[%s9 + $0x148] sm:$0xff]
    %v767 = vld [vmem:[%s9 + $0x150] sm:$0xff]
    %v768 = vld [vmem:[%s9 + $0x158] sm:$0xff]
    %v769 = vld [vmem:[%s9 + $0x160] sm:$0xff]
    %v770 = vld [vmem:[%s9 + $0x168] sm:$0xff]
    %v771 = vld [vmem:[%s9 + $0x170] sm:$0xff]
    %v772 = vld [vmem:[%s9 + $0x178] sm:$0xff]
    %v773 = vld [vmem:[%s9 + $0x180] sm:$0xff]
    %v774 = vld [vmem:[%s9 + $0x188] sm:$0xff]
    %v775 = vld [vmem:[%s9 + $0x190] sm:$0xff]
    %v776 = vld [vmem:[%s9 + $0x198] sm:$0xff]
    %v777 = vld [vmem:[%s9 + $0x1a0] sm:$0xff]
    %v778 = vld [vmem:[%s9 + $0x1a8] sm:$0xff]
    %v779 = vld [vmem:[%s9 + $0x1b0] sm:$0xff]
    %v780 = vld [vmem:[%s9 + $0x1b8] sm:$0xff]
    %v781 = vld [vmem:[%s9 + $0x1c0] sm:$0xff]
    %v782 = vld [vmem:[%s9 + $0x1c8] sm:$0xff]
    %v783 = vld [vmem:[%s9 + $0x1d0] sm:$0xff]
    %v784 = vld [vmem:[%s9 + $0x1d8] sm:$0xff]
    %v785 = vld [vmem:[%s9 + $0x1e0] sm:$0xff]
    %v786 = vld [vmem:[%s9 + $0x1e8] sm:$0xff]
    %v787 = vld [vmem:[%s9 + $0x1f0] sm:$0xff]
    %v788 = vld [vmem:[%s9 + $0x1f8] sm:$0xff]
    %v789 = vld [vmem:[%s10] sm:$0x3]
    %v791 = vlaneseq
    %v792 = vshrl.u32 %v791, 7
    %v793 = vsub.s32 0, %v792
    %v794 = vrot.slane %v789, %v793
    %v795 = vlaneseq
    %v796 = vshrl.u32 %v795, 7
    %v797 = vsub.s32 1, %v796
    %v798 = vrot.slane %v789, %v797
    %v865 = vunpack.c.l.b16 %v725
    %v866 = vunpack.c.h.b16 %v725
    %v867 = vunpack.c.l.b16 %v726
    %v868 = vunpack.c.h.b16 %v726
    %v869 = vunpack.c.l.b16 %v727
    %v870 = vunpack.c.h.b16 %v727
    %v871 = vunpack.c.l.b16 %v728
    %v872 = vunpack.c.h.b16 %v728
    %v873 = vunpack.c.l.b16 %v729
    %v874 = vunpack.c.h.b16 %v729
    %v875 = vunpack.c.l.b16 %v730
    %v876 = vunpack.c.h.b16 %v730
    %v877 = vunpack.c.l.b16 %v731
    %v878 = vunpack.c.h.b16 %v731
    %v879 = vunpack.c.l.b16 %v732
    %v880 = vunpack.c.h.b16 %v732
    %v881 = vunpack.c.l.b16 %v733
    %v882 = vunpack.c.h.b16 %v733
    %v883 = vunpack.c.l.b16 %v734
    %v884 = vunpack.c.h.b16 %v734
    %v885 = vunpack.c.l.b16 %v735
    %v886 = vunpack.c.h.b16 %v735
    %v887 = vunpack.c.l.b16 %v736
    %v888 = vunpack.c.h.b16 %v736
    %v889 = vunpack.c.l.b16 %v737
    %v890 = vunpack.c.h.b16 %v737
    %v891 = vunpack.c.l.b16 %v738
    %v892 = vunpack.c.h.b16 %v738
    %v893 = vunpack.c.l.b16 %v739
    %v894 = vunpack.c.h.b16 %v739
    %v895 = vunpack.c.l.b16 %v740
    %v896 = vunpack.c.h.b16 %v740
    %v897 = vunpack.c.l.b16 %v741
    %v898 = vunpack.c.h.b16 %v741
    %v899 = vunpack.c.l.b16 %v742
    %v900 = vunpack.c.h.b16 %v742
    %v901 = vunpack.c.l.b16 %v743
    %v902 = vunpack.c.h.b16 %v743
    %v903 = vunpack.c.l.b16 %v744
    %v904 = vunpack.c.h.b16 %v744
    %v905 = vunpack.c.l.b16 %v745
    %v906 = vunpack.c.h.b16 %v745
    %v907 = vunpack.c.l.b16 %v746
    %v908 = vunpack.c.h.b16 %v746
    %v909 = vunpack.c.l.b16 %v747
    %v910 = vunpack.c.h.b16 %v747
    %v911 = vunpack.c.l.b16 %v748
    %v912 = vunpack.c.h.b16 %v748
    %v913 = vunpack.c.l.b16 %v749
    %v914 = vunpack.c.h.b16 %v749
    %v915 = vunpack.c.l.b16 %v750
    %v916 = vunpack.c.h.b16 %v750
    %v917 = vunpack.c.l.b16 %v751
    %v918 = vunpack.c.h.b16 %v751
    %v919 = vunpack.c.l.b16 %v752
    %v920 = vunpack.c.h.b16 %v752
    %v921 = vunpack.c.l.b16 %v753
    %v922 = vunpack.c.h.b16 %v753
    %v923 = vunpack.c.l.b16 %v754
    %v924 = vunpack.c.h.b16 %v754
    %v925 = vunpack.c.l.b16 %v755
    %v926 = vunpack.c.h.b16 %v755
    %v927 = vunpack.c.l.b16 %v756
    %v928 = vunpack.c.h.b16 %v756
    %v929 = vunpack.c.l.b16 %v757
    %v930 = vunpack.c.h.b16 %v757
    %v931 = vunpack.c.l.b16 %v758
    %v932 = vunpack.c.h.b16 %v758
    %v933 = vunpack.c.l.b16 %v759
    %v934 = vunpack.c.h.b16 %v759
    %v935 = vunpack.c.l.b16 %v760
    %v936 = vunpack.c.h.b16 %v760
    %v937 = vunpack.c.l.b16 %v761
    %v938 = vunpack.c.h.b16 %v761
    %v939 = vunpack.c.l.b16 %v762
    %v940 = vunpack.c.h.b16 %v762
    %v941 = vunpack.c.l.b16 %v763
    %v942 = vunpack.c.h.b16 %v763
    %v943 = vunpack.c.l.b16 %v764
    %v944 = vunpack.c.h.b16 %v764
    %v945 = vunpack.c.l.b16 %v765
    %v946 = vunpack.c.h.b16 %v765
    %v947 = vunpack.c.l.b16 %v766
    %v948 = vunpack.c.h.b16 %v766
    %v949 = vunpack.c.l.b16 %v767
    %v950 = vunpack.c.h.b16 %v767
    %v951 = vunpack.c.l.b16 %v768
    %v952 = vunpack.c.h.b16 %v768
    %v953 = vunpack.c.l.b16 %v769
    %v954 = vunpack.c.h.b16 %v769
    %v955 = vunpack.c.l.b16 %v770
    %v956 = vunpack.c.h.b16 %v770
    %v957 = vunpack.c.l.b16 %v771
    %v958 = vunpack.c.h.b16 %v771
    %v959 = vunpack.c.l.b16 %v772
    %v960 = vunpack.c.h.b16 %v772
    %v961 = vunpack.c.l.b16 %v773
    %v962 = vunpack.c.h.b16 %v773
    %v963 = vunpack.c.l.b16 %v774
    %v964 = vunpack.c.h.b16 %v774
    %v965 = vunpack.c.l.b16 %v775
    %v966 = vunpack.c.h.b16 %v775
    %v967 = vunpack.c.l.b16 %v776
    %v968 = vunpack.c.h.b16 %v776
    %v969 = vunpack.c.l.b16 %v777
    %v970 = vunpack.c.h.b16 %v777
    %v971 = vunpack.c.l.b16 %v778
    %v972 = vunpack.c.h.b16 %v778
    %v973 = vunpack.c.l.b16 %v779
    %v974 = vunpack.c.h.b16 %v779
    %v975 = vunpack.c.l.b16 %v780
    %v976 = vunpack.c.h.b16 %v780
    %v977 = vunpack.c.l.b16 %v781
    %v978 = vunpack.c.h.b16 %v781
    %v979 = vunpack.c.l.b16 %v782
    %v980 = vunpack.c.h.b16 %v782
    %v981 = vunpack.c.l.b16 %v783
    %v982 = vunpack.c.h.b16 %v783
    %v983 = vunpack.c.l.b16 %v784
    %v984 = vunpack.c.h.b16 %v784
    %v985 = vunpack.c.l.b16 %v785
    %v986 = vunpack.c.h.b16 %v785
    %v987 = vunpack.c.l.b16 %v786
    %v988 = vunpack.c.h.b16 %v786
    %v989 = vunpack.c.l.b16 %v787
    %v990 = vunpack.c.h.b16 %v787
    %v991 = vunpack.c.l.b16 %v788
    %v992 = vunpack.c.h.b16 %v788
    %v993 = vpack.c.b16 %v867, %v865
    %v994 = vpack.c.b16 %v868, %v866
    %v995 = vpack.c.b16 %v871, %v869
    %v996 = vpack.c.b16 %v872, %v870
    %v997 = vpack.c.b16 %v875, %v873
    %v998 = vpack.c.b16 %v876, %v874
    %v999 = vpack.c.b16 %v879, %v877
    %v1000 = vpack.c.b16 %v880, %v878
    %v1001 = vpack.c.b16 %v883, %v881
    %v1002 = vpack.c.b16 %v884, %v882
    %v1003 = vpack.c.b16 %v887, %v885
    %v1004 = vpack.c.b16 %v888, %v886
    %v1005 = vpack.c.b16 %v891, %v889
    %v1006 = vpack.c.b16 %v892, %v890
    %v1007 = vpack.c.b16 %v895, %v893
    %v1008 = vpack.c.b16 %v896, %v894
    %v1009 = vpack.c.b16 %v899, %v897
    %v1010 = vpack.c.b16 %v900, %v898
    %v1011 = vpack.c.b16 %v903, %v901
    %v1012 = vpack.c.b16 %v904, %v902
    %v1013 = vpack.c.b16 %v907, %v905
    %v1014 = vpack.c.b16 %v908, %v906
    %v1015 = vpack.c.b16 %v911, %v909
    %v1016 = vpack.c.b16 %v912, %v910
    %v1017 = vpack.c.b16 %v915, %v913
    %v1018 = vpack.c.b16 %v916, %v914
    %v1019 = vpack.c.b16 %v919, %v917
    %v1020 = vpack.c.b16 %v920, %v918
    %v1021 = vpack.c.b16 %v923, %v921
    %v1022 = vpack.c.b16 %v924, %v922
    %v1023 = vpack.c.b16 %v927, %v925
    %v1024 = vpack.c.b16 %v928, %v926
    %v1025 = vpack.c.b16 %v931, %v929
    %v1026 = vpack.c.b16 %v932, %v930
    %v1027 = vpack.c.b16 %v935, %v933
    %v1028 = vpack.c.b16 %v936, %v934
    %v1029 = vpack.c.b16 %v939, %v937
    %v1030 = vpack.c.b16 %v940, %v938
    %v1031 = vpack.c.b16 %v943, %v941
    %v1032 = vpack.c.b16 %v944, %v942
    %v1033 = vpack.c.b16 %v947, %v945
    %v1034 = vpack.c.b16 %v948, %v946
    %v1035 = vpack.c.b16 %v951, %v949
    %v1036 = vpack.c.b16 %v952, %v950
    %v1037 = vpack.c.b16 %v955, %v953
    %v1038 = vpack.c.b16 %v956, %v954
    %v1039 = vpack.c.b16 %v959, %v957
    %v1040 = vpack.c.b16 %v960, %v958
    %v1041 = vpack.c.b16 %v963, %v961
    %v1042 = vpack.c.b16 %v964, %v962
    %v1043 = vpack.c.b16 %v967, %v965
    %v1044 = vpack.c.b16 %v968, %v966
    %v1045 = vpack.c.b16 %v971, %v969
    %v1046 = vpack.c.b16 %v972, %v970
    %v1047 = vpack.c.b16 %v975, %v973
    %v1048 = vpack.c.b16 %v976, %v974
    %v1049 = vpack.c.b16 %v979, %v977
    %v1050 = vpack.c.b16 %v980, %v978
    %v1051 = vpack.c.b16 %v983, %v981
    %v1052 = vpack.c.b16 %v984, %v982
    %v1053 = vpack.c.b16 %v987, %v985
    %v1054 = vpack.c.b16 %v988, %v986
    %v1055 = vpack.c.b16 %v991, %v989
    %v1056 = vpack.c.b16 %v992, %v990
    %1121 = vmatprep.subr.bf16.mxu0 %v1008
    %1122 = vmatpush1.bf16.msra.mxu0 %v1007
    %1123 = vmatprep.subr.bf16.mxu0 %v1006
    %1124 = vmatpush1.bf16.msra.mxu0 %v1005
    %1125 = vmatprep.subr.bf16.mxu0 %v1004
    %1126 = vmatpush1.bf16.msra.mxu0 %v1003
    %1127 = vmatprep.subr.bf16.mxu0 %v1002
    %1128 = vmatpush1.bf16.msra.mxu0 %v1001
    %1129 = vmatprep.subr.bf16.mxu0 %v1000
    %1130 = vmatpush1.bf16.msra.mxu0 %v999
    %1131 = vmatprep.subr.bf16.mxu0 %v998
    %1132 = vmatpush1.bf16.msra.mxu0 %v997
    %1133 = vmatprep.subr.bf16.mxu0 %v996
    %1134 = vmatpush1.bf16.msra.mxu0 %v995
    %1135 = vmatprep.subr.bf16.mxu0 %v994
    %1136 = vmatpush1.bf16.msra.mxu0 %v993
    %1137 = vmatprep.subr.bf16.mxu0 %v1024
    %1138 = vmatpush2.bf16.msra.mxu0 %v1023
    %1139 = vmatprep.subr.bf16.mxu0 %v1022
    %1140 = vmatpush2.bf16.msra.mxu0 %v1021
    %1141 = vmatprep.subr.bf16.mxu0 %v1020
    %1142 = vmatpush2.bf16.msra.mxu0 %v1019
    %1143 = vmatprep.subr.bf16.mxu0 %v1018
    %1144 = vmatpush2.bf16.msra.mxu0 %v1017
    %1145 = vmatprep.subr.bf16.mxu0 %v1016
    %1146 = vmatpush2.bf16.msra.mxu0 %v1015
    %1147 = vmatprep.subr.bf16.mxu0 %v1014
    %1148 = vmatpush2.bf16.msra.mxu0 %v1013
    %1149 = vmatprep.subr.bf16.mxu0 %v1012
    %1150 = vmatpush2.bf16.msra.mxu0 %v1011
    %1151 = vmatprep.subr.bf16.mxu0 %v1010
    %1152 = vmatpush2.bf16.msra.mxu0 %v1009
    %1153 = vmatprep.mubr.bf16.mxu0 %v722
    %1154 = vmatmul.mubr.bf16.gmra.mxu0 %v721
    %v1155 = vpop.f32.mrf.mxu0
    %v1156 = vadd.f32 %v794, %v1155
    %v1157 = vpop.f32.mrf.mxu0
    %v1158 = vadd.f32 %v798, %v1157
    %v1159 = vpop.f32.mrf.mxu0
    %v1160 = vpop.f32.mrf.mxu0
    %1161 = vdwg.mxu0
    %1162 = vmatprep.subr.bf16.mxu0 %v1040
    %1163 = vmatpush1.bf16.msra.mxu0 %v1039
    %1164 = vmatprep.subr.bf16.mxu0 %v1038
    %1165 = vmatpush1.bf16.msra.mxu0 %v1037
    %1166 = vmatprep.subr.bf16.mxu0 %v1036
    %1167 = vmatpush1.bf16.msra.mxu0 %v1035
    %1168 = vmatprep.subr.bf16.mxu0 %v1034
    %1169 = vmatpush1.bf16.msra.mxu0 %v1033
    %1170 = vmatprep.subr.bf16.mxu0 %v1032
    %1171 = vmatpush1.bf16.msra.mxu0 %v1031
    %1172 = vmatprep.subr.bf16.mxu0 %v1030
    %1173 = vmatpush1.bf16.msra.mxu0 %v1029
    %1174 = vmatprep.subr.bf16.mxu0 %v1028
    %1175 = vmatpush1.bf16.msra.mxu0 %v1027
    %1176 = vmatprep.subr.bf16.mxu0 %v1026
    %1177 = vmatpush1.bf16.msra.mxu0 %v1025
    %1178 = vmatprep.subr.bf16.mxu0 %v1056
    %1179 = vmatpush2.bf16.msra.mxu0 %v1055
    %1180 = vmatprep.subr.bf16.mxu0 %v1054
    %1181 = vmatpush2.bf16.msra.mxu0 %v1053
    %1182 = vmatprep.subr.bf16.mxu0 %v1052
    %1183 = vmatpush2.bf16.msra.mxu0 %v1051
    %1184 = vmatprep.subr.bf16.mxu0 %v1050
    %1185 = vmatpush2.bf16.msra.mxu0 %v1049
    %1186 = vmatprep.subr.bf16.mxu0 %v1048
    %1187 = vmatpush2.bf16.msra.mxu0 %v1047
    %1188 = vmatprep.subr.bf16.mxu0 %v1046
    %1189 = vmatpush2.bf16.msra.mxu0 %v1045
    %1190 = vmatprep.subr.bf16.mxu0 %v1044
    %1191 = vmatpush2.bf16.msra.mxu0 %v1043
    %1192 = vmatprep.subr.bf16.mxu0 %v1042
    %1193 = vmatpush2.bf16.msra.mxu0 %v1041
    %1194 = vmatprep.mubr.bf16.mxu0 %v724
    %1195 = vmatmul.mubr.bf16.gmra.mxu0 %v723
    %v1196 = vpop.f32.mrf.mxu0
    %v1197 = vadd.f32 %v1156, %v1196
    %v1198 = vpop.f32.mrf.mxu0
    %v1199 = vadd.f32 %v1158, %v1198
    %v1200 = vpop.f32.mrf.mxu0
    %v1201 = vpop.f32.mrf.mxu0
    %1202 = vdwg.mxu0
    %v1203 = vld [vmem:[%s11] sm:$0x3]
    %v1204 = vld [vmem:[%s12] sm:$0x3]
    %v1205 = vadd.f32 %v1197, %v1199
    %1206 = vadd.xlane.f32.xlu0 %v1205
    %v1207 = vpop.xlane.xlu0 %1206
    %v1208 = vmul.f32 %v1207, %v106
    %v1209 = vsub.f32 %v1197, %v1208
    %v1210 = vsub.f32 %v1199, %v1208
    %v1211 = vmul.f32 %v1209, %v1209
    %v1212 = vmul.f32 %v1210, %v1210
    %v1213 = vadd.f32 %v1211, %v1212
    %1214 = vadd.xlane.f32.xlu0 %v1213
    %v1215 = vpop.xlane.xlu0 %1214
    %v1216 = vmul.f32 %v1215, %v106
    %v1217 = vadd.f32 %v1216, 1e-05
    %v1218 = vrsqrt.pop %v1217
    %v1219 = vmul.f32 %v1209, %v1218
    %v1220 = vmul.f32 %v1210, %v1218
    %v1222 = vlaneseq
    %v1223 = vshrl.u32 %v1222, 7
    %v1224 = vsub.s32 0, %v1223
    %v1225 = vrot.slane %v1203, %v1224
    %v1226 = vlaneseq
    %v1227 = vshrl.u32 %v1226, 7
    %v1228 = vsub.s32 1, %v1227
    %v1229 = vrot.slane %v1203, %v1228
    %v1232 = vmul.f32 %v1219, %v1225
    %v1233 = vmul.f32 %v1220, %v1229
    %v1235 = vlaneseq
    %v1236 = vshrl.u32 %v1235, 7
    %v1237 = vsub.s32 0, %v1236
    %v1238 = vrot.slane %v1204, %v1237
    %v1239 = vlaneseq
    %v1240 = vshrl.u32 %v1239, 7
    %v1241 = vsub.s32 1, %v1240
    %v1242 = vrot.slane %v1204, %v1241
    %v1245 = vadd.f32 %v1232, %v1238
    %v1246 = vadd.f32 %v1233, %v1242
    %v1247 = vmax.f32 %v1245, 0.0
    %v1248 = vmax.f32 %v1246, 0.0
    %v1249 = vpack.c.bf16 %v1247, %v1247
    %v1250 = vpack.c.bf16 %v1248, %v1248
    %v1251 = vld [vmem:[%s13] sm:$0xf]
    %v1252 = vld [vmem:[%s13 + $0x4] sm:$0xf]
    %v1253 = vld [vmem:[%s13 + $0x8] sm:$0xf]
    %v1254 = vld [vmem:[%s13 + $0xc] sm:$0xf]
    %v1255 = vld [vmem:[%s13 + $0x10] sm:$0xf]
    %v1256 = vld [vmem:[%s13 + $0x14] sm:$0xf]
    %v1257 = vld [vmem:[%s13 + $0x18] sm:$0xf]
    %v1258 = vld [vmem:[%s13 + $0x1c] sm:$0xf]
    %v1259 = vld [vmem:[%s13 + $0x20] sm:$0xf]
    %v1260 = vld [vmem:[%s13 + $0x24] sm:$0xf]
    %v1261 = vld [vmem:[%s13 + $0x28] sm:$0xf]
    %v1262 = vld [vmem:[%s13 + $0x2c] sm:$0xf]
    %v1263 = vld [vmem:[%s13 + $0x30] sm:$0xf]
    %v1264 = vld [vmem:[%s13 + $0x34] sm:$0xf]
    %v1265 = vld [vmem:[%s13 + $0x38] sm:$0xf]
    %v1266 = vld [vmem:[%s13 + $0x3c] sm:$0xf]
    %v1267 = vld [vmem:[%s13 + $0x40] sm:$0xf]
    %v1268 = vld [vmem:[%s13 + $0x44] sm:$0xf]
    %v1269 = vld [vmem:[%s13 + $0x48] sm:$0xf]
    %v1270 = vld [vmem:[%s13 + $0x4c] sm:$0xf]
    %v1271 = vld [vmem:[%s13 + $0x50] sm:$0xf]
    %v1272 = vld [vmem:[%s13 + $0x54] sm:$0xf]
    %v1273 = vld [vmem:[%s13 + $0x58] sm:$0xf]
    %v1274 = vld [vmem:[%s13 + $0x5c] sm:$0xf]
    %v1275 = vld [vmem:[%s13 + $0x60] sm:$0xf]
    %v1276 = vld [vmem:[%s13 + $0x64] sm:$0xf]
    %v1277 = vld [vmem:[%s13 + $0x68] sm:$0xf]
    %v1278 = vld [vmem:[%s13 + $0x6c] sm:$0xf]
    %v1279 = vld [vmem:[%s13 + $0x70] sm:$0xf]
    %v1280 = vld [vmem:[%s13 + $0x74] sm:$0xf]
    %v1281 = vld [vmem:[%s13 + $0x78] sm:$0xf]
    %v1282 = vld [vmem:[%s13 + $0x7c] sm:$0xf]
    %v1283 = vld [vmem:[%s14] sm:$0x1]
    %v1285 = vlaneseq
    %v1286 = vshrl.u32 %v1285, 7
    %v1287 = vsub.s32 0, %v1286
    %v1288 = vrot.slane %v1283, %v1287
    %v1322 = vunpack.c.l.b16 %v1251
    %v1323 = vunpack.c.l.b16 %v1252
    %v1324 = vunpack.c.l.b16 %v1253
    %v1325 = vunpack.c.l.b16 %v1254
    %v1326 = vunpack.c.l.b16 %v1255
    %v1327 = vunpack.c.l.b16 %v1256
    %v1328 = vunpack.c.l.b16 %v1257
    %v1329 = vunpack.c.l.b16 %v1258
    %v1330 = vunpack.c.l.b16 %v1259
    %v1331 = vunpack.c.l.b16 %v1260
    %v1332 = vunpack.c.l.b16 %v1261
    %v1333 = vunpack.c.l.b16 %v1262
    %v1334 = vunpack.c.l.b16 %v1263
    %v1335 = vunpack.c.l.b16 %v1264
    %v1336 = vunpack.c.l.b16 %v1265
    %v1337 = vunpack.c.l.b16 %v1266
    %v1338 = vunpack.c.l.b16 %v1267
    %v1339 = vunpack.c.l.b16 %v1268
    %v1340 = vunpack.c.l.b16 %v1269
    %v1341 = vunpack.c.l.b16 %v1270
    %v1342 = vunpack.c.l.b16 %v1271
    %v1343 = vunpack.c.l.b16 %v1272
    %v1344 = vunpack.c.l.b16 %v1273
    %v1345 = vunpack.c.l.b16 %v1274
    %v1346 = vunpack.c.l.b16 %v1275
    %v1347 = vunpack.c.l.b16 %v1276
    %v1348 = vunpack.c.l.b16 %v1277
    %v1349 = vunpack.c.l.b16 %v1278
    %v1350 = vunpack.c.l.b16 %v1279
    %v1351 = vunpack.c.l.b16 %v1280
    %v1352 = vunpack.c.l.b16 %v1281
    %v1353 = vunpack.c.l.b16 %v1282
    %v1354 = vpack.c.b16 %v1323, %v1322
    %v1355 = vpack.c.b16 %v1325, %v1324
    %v1356 = vpack.c.b16 %v1327, %v1326
    %v1357 = vpack.c.b16 %v1329, %v1328
    %v1358 = vpack.c.b16 %v1331, %v1330
    %v1359 = vpack.c.b16 %v1333, %v1332
    %v1360 = vpack.c.b16 %v1335, %v1334
    %v1361 = vpack.c.b16 %v1337, %v1336
    %v1362 = vpack.c.b16 %v1339, %v1338
    %v1363 = vpack.c.b16 %v1341, %v1340
    %v1364 = vpack.c.b16 %v1343, %v1342
    %v1365 = vpack.c.b16 %v1345, %v1344
    %v1366 = vpack.c.b16 %v1347, %v1346
    %v1367 = vpack.c.b16 %v1349, %v1348
    %v1368 = vpack.c.b16 %v1351, %v1350
    %v1369 = vpack.c.b16 %v1353, %v1352
    %1386 = vmatprep.subr.bf16.mxu0 0
    %1387 = vmatpush1.bf16.msra.mxu0 %v1361
    %1388 = vmatprep.subr.bf16.mxu0 0
    %1389 = vmatpush1.bf16.msra.mxu0 %v1360
    %1390 = vmatprep.subr.bf16.mxu0 0
    %1391 = vmatpush1.bf16.msra.mxu0 %v1359
    %1392 = vmatprep.subr.bf16.mxu0 0
    %1393 = vmatpush1.bf16.msra.mxu0 %v1358
    %1394 = vmatprep.subr.bf16.mxu0 0
    %1395 = vmatpush1.bf16.msra.mxu0 %v1357
    %1396 = vmatprep.subr.bf16.mxu0 0
    %1397 = vmatpush1.bf16.msra.mxu0 %v1356
    %1398 = vmatprep.subr.bf16.mxu0 0
    %1399 = vmatpush1.bf16.msra.mxu0 %v1355
    %1400 = vmatprep.subr.bf16.mxu0 0
    %1401 = vmatpush1.bf16.msra.mxu0 %v1354
    %1402 = vmatprep.subr.bf16.mxu0 0
    %1403 = vmatpush2.bf16.msra.mxu0 %v1369
    %1404 = vmatprep.subr.bf16.mxu0 0
    %1405 = vmatpush2.bf16.msra.mxu0 %v1368
    %1406 = vmatprep.subr.bf16.mxu0 0
    %1407 = vmatpush2.bf16.msra.mxu0 %v1367
    %1408 = vmatprep.subr.bf16.mxu0 0
    %1409 = vmatpush2.bf16.msra.mxu0 %v1366
    %1410 = vmatprep.subr.bf16.mxu0 0
    %1411 = vmatpush2.bf16.msra.mxu0 %v1365
    %1412 = vmatprep.subr.bf16.mxu0 0
    %1413 = vmatpush2.bf16.msra.mxu0 %v1364
    %1414 = vmatprep.subr.bf16.mxu0 0
    %1415 = vmatpush2.bf16.msra.mxu0 %v1363
    %1416 = vmatprep.subr.bf16.mxu0 0
    %1417 = vmatpush2.bf16.msra.mxu0 %v1362
    %1418 = vmatprep.mubr.bf16.mxu0 %v1250
    %1419 = vmatmul.mubr.bf16.gmra.mxu0 %v1249
    %v1420 = vpop.f32.mrf.mxu0
    %v1421 = vadd.f32 %v1288, %v1420
    %v1422 = vpop.f32.mrf.mxu0
    %v1423 = vpop.f32.mrf.mxu0
    %v1424 = vpop.f32.mrf.mxu0
    %1425 = vdwg.mxu0
    %v1426 = vld [vmem:[%s15] sm:$0x1]
    %v1427 = vld [vmem:[%s16] sm:$0x1]
    %v1429 = vlaneseq
    %v1430 = vshrl.u32 %v1429, 7
    %v1431 = vsub.s32 0, %v1430
    %v1432 = vrot.slane %v1426, %v1431
    %v1434 = vmax.f32 %v1432, %v1421
    %v1436 = vlaneseq
    %v1437 = vshrl.u32 %v1436, 7
    %v1438 = vsub.s32 0, %v1437
    %v1439 = vrot.slane %v1427, %v1438
    %v1441 = vmin.f32 %v1439, %v1434
    %v1442 = vround.ne.pseudo %v1441
    %v1443 = vxor.u32 %v1441, 2147483648
    %v1444 = vmul.f32 %v1443, 1.442695
    %v1445 = vpow.pop %v1444
    %v1446 = vadd.f32 %v1445, 1.0
    %v1447 = vrcp.pop %v1446
    %v1448 = vmul.f32 1.0, %v1447
    %v1449 = vmin.f32 %v1441, 2.0
    %v1450 = vmul.f32 %v1449, 1.442695
    %v1451 = vpow.pop %v1450
    %v1452 = vld [vmem:[%s17] sm:$0x1]
    %v1454 = vlaneseq
    %v1455 = vshrl.u32 %v1454, 7
    %v1456 = vsub.s32 0, %v1455
    %v1457 = vrot.slane %v1452, %v1456
    %v1459 = vmul.f32 %v1457, %v1442
    %v1460 = vld [vmem:[%s18] sm:$0x1]
    %v1462 = vlaneseq
    %v1463 = vshrl.u32 %v1462, 7
    %v1464 = vsub.s32 0, %v1463
    %v1465 = vrot.slane %v1460, %v1464
    %v1467 = vmul.f32 %v1465, %v1448
    %v1468 = vadd.f32 %v1459, %v1467
    %v1469 = vld [vmem:[%s19] sm:$0x1]
    %v1471 = vlaneseq
    %v1472 = vshrl.u32 %v1471, 7
    %v1473 = vsub.s32 0, %v1472
    %v1474 = vrot.slane %v1469, %v1473
    %v1476 = vmul.f32 %v1474, %v1451
    %v1477 = vadd.f32 %v1468, %v1476
    %1478 = vst [vmem:[#allocation2] sm:$0xff] %v1477
    // Predicated region
    $region82: #{_esn_forward.1} parent=1 // pred_check
      _
    $region83: #{_esn_forward.1} parent=1 // pred_check_branch
      %1480 = sbr.rel (0) target = $region85
    $region84: #{_esn_forward.1} parent=1 // pred_region
      %s1482 = ssub.s32 128, 128
      %1483 = vsyncadd [#allocation3], %s1482
      %s1485 = sshll.u32 [#allocation2], 4
      %s1486 = int_to_ptr.vmem [resolvable:$true] %s1485
      %1488 = dma.vmem_to_hbm [thread:$0]  %s1486, 128, %s20, [#allocation3]
    $region85: #{_esn_forward.1} parent=1 // pred_fallthru
      _
    // Predicated region
    $region86: #{_esn_forward.1} parent=1 // pred_check
      _
    $region87: #{_esn_forward.1} parent=1 // pred_check_branch
      %1490 = sbr.rel (0) target = $region89
    $region88: #{_esn_forward.1} parent=1 // pred_region
      %1491 = dma.done [#allocation3], 128
    $region89: #{_esn_forward.1} parent=1 // pred_fallthru
      _
    %1492 = vsyncpa [#allocation3], 1

</llo_original>
